<compile_context>
chip_gen: v5e
topology: v5e:2x2
jax: 0.10.0
libtpu: 0.0.40
codegen_flags: <defaults>
</compile_context>

<pallas_src>
import functools
import math

import jax
import jax.numpy as jnp
import numpy as np
from jax.experimental import pallas as pl
from jax.experimental.pallas import tpu as pltpu


def _round_up(a, m):
    return -(-a // m) * m


# -----------------------------------------------------------------------------
# Pallas kernel: the whole TemporalBlock for one batch element.
# -----------------------------------------------------------------------------
def _temporal_block_kernel(x_ref, m_ref, w_ref, scale_ref, shift_ref, bias_ref,
                           o_ref, *, layer_meta, geom):
    """Fused BN(eval)+ReLU+dilated-Conv2d(+bias) for every layer, concat on C.

    x_ref:     (1, sh*sw, Hj, Jw, C_in)   polyphase, zero-embedded input
    m_ref:     (1, sh*sw, Hj, Jw, C_in)   1.0 on real data, 0.0 on padding
    w_ref:     (L, Kh, Kw, C_in, C_out)   stacked conv weights
    scale_ref: (L, 1, C_in)               folded BN scale per layer
    shift_ref: (L, 1, C_in)               folded BN shift per layer
    bias_ref:  (L, 1, C_out)              conv bias per layer
    o_ref:     (1, H_out, W_out, L*C_out) concatenated output (channels-last)
    """
    C_in, C_out, H_out, W_out, Kh, Kw, sh, sw, S = geom

    x = x_ref[...]          # loaded once, reused by every layer
    m = m_ref[...]

    for li, (dh, dw, pw) in enumerate(layer_meta):            # static loop
        # ---- BatchNorm2d (eval, folded) + ReLU; mask restores zero padding ---
        z = jnp.maximum(x * scale_ref[li] + shift_ref[li], 0.0) * m

        # ---- dilated / strided conv as a sum of per-tap matmuls --------------
        # Polyphase layout: padded column c = S - pw + kw*dw + sw*wo lives at
        # (phase = c % sw, index = c // sw)  ->  contiguous static slices only.
        acc = None
        for kh in range(Kh):
            rb = kh * dh
            ph_h, j0h = rb % sh, rb // sh
            for kw in range(Kw):
                cb = S - pw + kw * dw
                ph_w, j0w = cb % sw, cb // sw
                tap = z[0, ph_h * sw + ph_w,
                        j0h:j0h + H_out, j0w:j0w + W_out, :]
                contrib = jnp.dot(tap.reshape(H_out * W_out, C_in),
                                  w_ref[li, kh, kw],
                                  preferred_element_type=jnp.float32)
                acc = contrib if acc is None else acc + contrib

        out = (acc + bias_ref[li]).reshape(1, H_out, W_out, C_out)
        # torch.cat(features, dim=1) == layer-major channel order: write each
        # layer straight into its lane slice of the concatenated output.
        o_ref[:, :, :, li * C_out:(li + 1) * C_out] = out.astype(o_ref.dtype)
        # Dropout2d(0.2): identity at inference.


# -----------------------------------------------------------------------------
# Wrapper: one pallas_call for the whole block (grid over batch).
# -----------------------------------------------------------------------------
def temporal_block_forward(params, x_nchw):
    cfg = params["config"]
    Kh, Kw = cfg["kernel_size"]
    sh, sw = cfg["stride"]
    layer_meta = cfg["layer_meta"]                    # [(dh, dw, pw), ...]
    L = len(layer_meta)
    C_out = cfg["out_channels"]

    B, C_in, H, W = x_nchw.shape

    # Static output geometry; all layers must agree for the channel concat
    # (exactly like torch.cat in the reference module).  ph is always 0.
    h_outs = [(H - dh * (Kh - 1) - 1) // sh + 1 for dh, _, _ in layer_meta]
    w_outs = [(W + 2 * pw - dw * (Kw - 1) - 1) // sw + 1 for _, dw, pw in layer_meta]
    assert len(set(h_outs)) == 1 and len(set(w_outs)) == 1, (h_outs, w_outs)
    H_out, W_out = h_outs[0], w_outs[0]

    # Shared left zero margin (largest padding of any layer) and padded extents
    # large enough that every tap's contiguous window stays in-bounds.
    S = max(pw for _, _, pw in layer_meta)
    Wp_need = max([S + W] + [(S - pw + dw * (Kw - 1)) + sw * (W_out - 1) + 1
                             for _, dw, pw in layer_meta])
    Hp_need = max([H] + [dh * (Kh - 1) + sh * (H_out - 1) + 1
                         for dh, _, _ in layer_meta])
    Wp, Hp = _round_up(Wp_need, sw), _round_up(Hp_need, sh)
    Hj, Jw = Hp // sh, Wp // sw

    # ---- layout plumbing (XLA, done once per forward; constants under jit) ---
    x_bhwc = jnp.transpose(x_nchw.astype(jnp.float32), (0, 2, 3, 1))
    x_pad = jnp.zeros((B, Hp, Wp, C_in), jnp.float32)
    x_pad = x_pad.at[:, :H, S:S + W, :].set(x_bhwc)
    x_poly = (x_pad.reshape(B, Hj, sh, Jw, sw, C_in)
              .transpose(0, 2, 4, 1, 3, 5)
              .reshape(B, sh * sw, Hj, Jw, C_in))

    m_np = np.zeros((1, Hp, Wp, C_in), np.float32)
    m_np[:, :H, S:S + W, :] = 1.0
    m_poly = jnp.asarray(m_np.reshape(1, Hj, sh, Jw, sw, C_in)
                         .transpose(0, 2, 4, 1, 3, 5)
                         .reshape(1, sh * sw, Hj, Jw, C_in))

    geom = (C_in, C_out, H_out, W_out, Kh, Kw, sh, sw, S)
    kernel = functools.partial(_temporal_block_kernel,
                               layer_meta=tuple(layer_meta), geom=geom)

    out_bhwc = pl.pallas_call(
        kernel,
        grid=(B,),
        out_shape=jax.ShapeDtypeStruct((B, H_out, W_out, L * C_out), jnp.float32),
        in_specs=[
            pl.BlockSpec((1, sh * sw, Hj, Jw, C_in), lambda b: (b, 0, 0, 0, 0)),
            pl.BlockSpec((1, sh * sw, Hj, Jw, C_in), lambda b: (0, 0, 0, 0, 0)),
            pl.BlockSpec((L, Kh, Kw, C_in, C_out), lambda b: (0, 0, 0, 0, 0)),
            pl.BlockSpec((L, 1, C_in), lambda b: (0, 0, 0)),
            pl.BlockSpec((L, 1, C_in), lambda b: (0, 0, 0)),
            pl.BlockSpec((L, 1, C_out), lambda b: (0, 0, 0)),
        ],
        out_specs=pl.BlockSpec((1, H_out, W_out, L * C_out),
                               lambda b: (b, 0, 0, 0)),
        compiler_params=pltpu.CompilerParams(
            dimension_semantics=("parallel",)),
    )(x_poly, m_poly, params["w"], params["scale"], params["shift"], params["bias"])

    # Back to PyTorch NCHW.  Channel order = layer-major = torch.cat(features, 1).
    return jnp.transpose(out_bhwc, (0, 3, 1, 2))


# -----------------------------------------------------------------------------
# Parameters (replicates TemporalBlock.__init__ bookkeeping; BN folding and
# weight-layout transposes are hoisted here, out of the forward path).
# -----------------------------------------------------------------------------
def build_params(key, in_channels, out_channels, n_layers, kernel_size,
                 stride, dilation_list, in_size=None):
    del in_size  # unused by the original module as well
    dilation_list = [tuple(d) for d in dilation_list]
    if len(dilation_list) < n_layers:
        dilation_list = dilation_list + [dilation_list[-1]] * (n_layers - len(dilation_list))
    padding = []
    for dilation in dilation_list:
        filter_size = kernel_size[1] * dilation[1] - 1
        temp_pad = math.floor((filter_size - 1) / 2) - 1 * (dilation[1] // 2 - 1)
        padding.append((0, temp_pad))
    assert all(p[1] >= 0 for p in padding), padding

    Kh, Kw = kernel_size
    bound = 1.0 / math.sqrt(in_channels * Kh * Kw)    # PyTorch Conv2d default
    eps = 1e-5

    layers_raw = []
    for k in jax.random.split(key, n_layers):
        k1, k2, k3, k4, k5, k6 = jax.random.split(k, 6)
        layers_raw.append(dict(
            w=jax.random.uniform(k1, (out_channels, in_channels, Kh, Kw),
                                 jnp.float32, -bound, bound),
            b=jax.random.uniform(k2, (out_channels,), jnp.float32, -bound, bound),
            gamma=jax.random.uniform(k3, (in_channels,), jnp.float32, 0.5, 1.5),
            beta=0.1 * jax.random.normal(k4, (in_channels,), jnp.float32),
            mean=0.1 * jax.random.normal(k5, (in_channels,), jnp.float32),
            var=jax.random.uniform(k6, (in_channels,), jnp.float32, 0.5, 1.5),
        ))

    # ---- hoisted, kernel-ready packed parameters -----------------------------
    scale = jnp.stack([l["gamma"] / jnp.sqrt(l["var"] + eps) for l in layers_raw])
    shift = jnp.stack([l["beta"] - l["mean"] * (l["gamma"] / jnp.sqrt(l["var"] + eps))
                       for l in layers_raw])
    w_stack = jnp.stack([jnp.transpose(l["w"], (2, 3, 1, 0)) for l in layers_raw])
    bias = jnp.stack([l["b"] for l in layers_raw])

    config = dict(
        in_channels=in_channels, out_channels=out_channels,
        kernel_size=tuple(kernel_size), stride=tuple(stride),
        dilation_list=dilation_list, padding=[tuple(p) for p in padding],
        layer_meta=[(dilation_list[i][0], dilation_list[i][1], padding[i][1])
                    for i in range(n_layers)],
    )
    return dict(
        config=config,
        layers_raw=layers_raw,                        # for the pure-JAX reference
        w=w_stack,                                    # (L, Kh, Kw, C_in, C_out)
        scale=scale.reshape(n_layers, 1, in_channels),
        shift=shift.reshape(n_layers, 1, in_channels),
        bias=bias.reshape(n_layers, 1, out_channels),
    )


# -----------------------------------------------------------------------------
# Pure-JAX reference (eval-mode PyTorch semantics) for checking.
# -----------------------------------------------------------------------------
def forward_ref(params, x_nchw):
    cfg = params["config"]
    eps = 1e-5
    outs = []
    for i, lp in enumerate(params["layers_raw"]):
        s = lp["gamma"] / jnp.sqrt(lp["var"] + eps)
        z = (x_nchw - lp["mean"][None, :, None, None]) * s[None, :, None, None] \
            + lp["beta"][None, :, None, None]
        z = jnp.maximum(z, 0.0)
        ph, pw = cfg["padding"][i]
        o = jax.lax.conv_general_dilated(
            z, lp["w"], window_strides=cfg["stride"],
            padding=[(ph, ph), (pw, pw)],
            rhs_dilation=cfg["dilation_list"][i],
            dimension_numbers=("NCHW", "OIHW", "NCHW"))
        outs.append(o + lp["b"][None, :, None, None])
    return jnp.concatenate(outs, axis=1)


# -----------------------------------------------------------------------------
# Main
# -----------------------------------------------------------------------------
if __name__ == "__main__":
    key = jax.random.PRNGKey(0)
    k_params, k_x = jax.random.split(key)

    # Small, module-consistent config: EEG-style temporal block.
    in_channels, out_channels = 4, 8
    n_layers = 3
    kernel_size = (1, 3)
    stride = (1, 2)
    dilation_list = [(1, 1), (1, 2)]   # shorter than n_layers -> exercises extension
    B, H, W = 2, 8, 32

    params = build_params(k_params, in_channels, out_channels, n_layers,
                          kernel_size, stride, dilation_list, in_size=W)
    x = jax.random.normal(k_x, (B, in_channels, H, W), jnp.float32)

    fwd = jax.jit(lambda inp: temporal_block_forward(params, inp))
    out = jax.block_until_ready(fwd(x))
    ref = forward_ref(params, x)

    assert out.shape == ref.shape, (out.shape, ref.shape)
    # expected: (B, n_layers*out_channels, H_out, W_out) = (2, 24, 8, 16)
    assert out.shape == (B, n_layers * out_channels, 8, 16), out.shape
    np.testing.assert_allclose(np.asarray(out), np.asarray(ref),
                               rtol=1e-2, atol=1e-2)

    print("KERNEL_OK")
</pallas_src>

<mosaic_0001>
module attributes {stable_mosaic.version = 11 : i64} {
  func.func @_temporal_block_kernel(%arg0: i32, %arg1: memref<1x2x8x18x4xf32, #tpu.memory_space<vmem>>, %arg2: memref<1x2x8x18x4xf32, #tpu.memory_space<vmem>>, %arg3: memref<3x1x3x4x8xf32, #tpu.memory_space<vmem>>, %arg4: memref<3x1x4xf32, #tpu.memory_space<vmem>>, %arg5: memref<3x1x4xf32, #tpu.memory_space<vmem>>, %arg6: memref<3x1x8xf32, #tpu.memory_space<vmem>>, %arg7: memref<1x8x16x24xf32, #tpu.memory_space<vmem>>) attributes {dimension_semantics = [#tpu.dimension_semantics<parallel>], iteration_bounds = array<i64: 2>, scalar_prefetch = 0 : i64, scratch_operands = 0 : i64, tpu.core_type = #tpu.core_type<tc>, window_params = [{transform_indices = @transform_0, window_bounds = array<i64: 1, 2, 8, 18, 4>}, {pipeline_mode = #tpu.pipeline_mode<synchronous>, transform_indices = @transform_1, window_bounds = array<i64: 1, 2, 8, 18, 4>}, {pipeline_mode = #tpu.pipeline_mode<synchronous>, transform_indices = @transform_2, window_bounds = array<i64: 3, 1, 3, 4, 8>}, {pipeline_mode = #tpu.pipeline_mode<synchronous>, transform_indices = @transform_3, window_bounds = array<i64: 3, 1, 4>}, {pipeline_mode = #tpu.pipeline_mode<synchronous>, transform_indices = @transform_4, window_bounds = array<i64: 3, 1, 4>}, {pipeline_mode = #tpu.pipeline_mode<synchronous>, transform_indices = @transform_5, window_bounds = array<i64: 3, 1, 8>}, {transform_indices = @transform_6, window_bounds = array<i64: 1, 8, 16, 24>}]} {
    %c0 = arith.constant 0 : index
    %c0_0 = arith.constant 0 : index
    %c0_1 = arith.constant 0 : index
    %c0_2 = arith.constant 0 : index
    %c0_3 = arith.constant 0 : index
    %0 = vector.load %arg1[%c0, %c0_0, %c0_1, %c0_2, %c0_3] : memref<1x2x8x18x4xf32, #tpu.memory_space<vmem>>, vector<1x2x8x18x4xf32>
    %c0_4 = arith.constant 0 : index
    %c0_5 = arith.constant 0 : index
    %c0_6 = arith.constant 0 : index
    %c0_7 = arith.constant 0 : index
    %c0_8 = arith.constant 0 : index
    %1 = vector.load %arg2[%c0_4, %c0_5, %c0_6, %c0_7, %c0_8] : memref<1x2x8x18x4xf32, #tpu.memory_space<vmem>>, vector<1x2x8x18x4xf32>
    %c0_9 = arith.constant 0 : index
    %c0_10 = arith.constant 0 : index
    %c0_11 = arith.constant 0 : index
    %2 = vector.load %arg4[%c0_9, %c0_10, %c0_11] : memref<3x1x4xf32, #tpu.memory_space<vmem>>, vector<1x1x4xf32>
    %3 = vector.shape_cast %2 : vector<1x1x4xf32> to vector<1x4xf32>
    %4 = vector.shape_cast %3 : vector<1x4xf32> to vector<1x1x1x1x4xf32>
    %5 = vector.broadcast %4 : vector<1x1x1x1x4xf32> to vector<1x2x8x18x4xf32>
    %6 = arith.mulf %0, %5 : vector<1x2x8x18x4xf32>
    %c0_12 = arith.constant 0 : index
    %c0_13 = arith.constant 0 : index
    %c0_14 = arith.constant 0 : index
    %7 = vector.load %arg5[%c0_12, %c0_13, %c0_14] : memref<3x1x4xf32, #tpu.memory_space<vmem>>, vector<1x1x4xf32>
    %8 = vector.shape_cast %7 : vector<1x1x4xf32> to vector<1x4xf32>
    %9 = vector.shape_cast %8 : vector<1x4xf32> to vector<1x1x1x1x4xf32>
    %10 = vector.broadcast %9 : vector<1x1x1x1x4xf32> to vector<1x2x8x18x4xf32>
    %11 = arith.addf %6, %10 : vector<1x2x8x18x4xf32>
    %cst = arith.constant 0.000000e+00 : f32
    %12 = vector.broadcast %cst : f32 to vector<1x2x8x18x4xf32>
    %13 = arith.maximumf %11, %12 : vector<1x2x8x18x4xf32>
    %14 = arith.mulf %13, %1 : vector<1x2x8x18x4xf32>
    %15 = vector.extract_strided_slice %14 {offsets = [0, 1, 0, 0, 0], sizes = [1, 1, 8, 16, 4], strides = [1, 1, 1, 1, 1]} : vector<1x2x8x18x4xf32> to vector<1x1x8x16x4xf32>
    %16 = vector.shape_cast %15 : vector<1x1x8x16x4xf32> to vector<8x16x4xf32>
    %17 = vector.shape_cast %16 : vector<8x16x4xf32> to vector<128x4xf32>
    %c0_15 = arith.constant 0 : index
    %c0_16 = arith.constant 0 : index
    %c0_17 = arith.constant 0 : index
    %c0_18 = arith.constant 0 : index
    %c0_19 = arith.constant 0 : index
    %18 = vector.load %arg3[%c0_15, %c0_16, %c0_17, %c0_18, %c0_19] : memref<3x1x3x4x8xf32, #tpu.memory_space<vmem>>, vector<1x1x1x4x8xf32>
    %19 = vector.shape_cast %18 : vector<1x1x1x4x8xf32> to vector<4x8xf32>
    %cst_20 = arith.constant dense<0.000000e+00> : vector<128x8xf32>
    %20 = tpu.matmul %17, %19, %cst_20 {dimension_numbers = #tpu.dot_dimension_numbers<[1], [0], [0], [1], [0, 0, 1, 1], [], []>} : vector<128x4xf32>, vector<4x8xf32>, vector<128x8xf32> -> vector<128x8xf32>
    %21 = vector.extract_strided_slice %14 {offsets = [0, 0, 0, 1, 0], sizes = [1, 1, 8, 16, 4], strides = [1, 1, 1, 1, 1]} : vector<1x2x8x18x4xf32> to vector<1x1x8x16x4xf32>
    %22 = vector.shape_cast %21 : vector<1x1x8x16x4xf32> to vector<8x16x4xf32>
    %23 = vector.shape_cast %22 : vector<8x16x4xf32> to vector<128x4xf32>
    %c0_21 = arith.constant 0 : index
    %c0_22 = arith.constant 0 : index
    %c1 = arith.constant 1 : index
    %c0_23 = arith.constant 0 : index
    %c0_24 = arith.constant 0 : index
    %24 = vector.load %arg3[%c0_21, %c0_22, %c1, %c0_23, %c0_24] : memref<3x1x3x4x8xf32, #tpu.memory_space<vmem>>, vector<1x1x1x4x8xf32>
    %25 = vector.shape_cast %24 : vector<1x1x1x4x8xf32> to vector<4x8xf32>
    %cst_25 = arith.constant dense<0.000000e+00> : vector<128x8xf32>
    %26 = tpu.matmul %23, %25, %cst_25 {dimension_numbers = #tpu.dot_dimension_numbers<[1], [0], [0], [1], [0, 0, 1, 1], [], []>} : vector<128x4xf32>, vector<4x8xf32>, vector<128x8xf32> -> vector<128x8xf32>
    %27 = arith.addf %20, %26 : vector<128x8xf32>
    %28 = vector.extract_strided_slice %14 {offsets = [0, 1, 0, 1, 0], sizes = [1, 1, 8, 16, 4], strides = [1, 1, 1, 1, 1]} : vector<1x2x8x18x4xf32> to vector<1x1x8x16x4xf32>
    %29 = vector.shape_cast %28 : vector<1x1x8x16x4xf32> to vector<8x16x4xf32>
    %30 = vector.shape_cast %29 : vector<8x16x4xf32> to vector<128x4xf32>
    %c0_26 = arith.constant 0 : index
    %c0_27 = arith.constant 0 : index
    %c2 = arith.constant 2 : index
    %c0_28 = arith.constant 0 : index
    %c0_29 = arith.constant 0 : index
    %31 = vector.load %arg3[%c0_26, %c0_27, %c2, %c0_28, %c0_29] : memref<3x1x3x4x8xf32, #tpu.memory_space<vmem>>, vector<1x1x1x4x8xf32>
    %32 = vector.shape_cast %31 : vector<1x1x1x4x8xf32> to vector<4x8xf32>
    %cst_30 = arith.constant dense<0.000000e+00> : vector<128x8xf32>
    %33 = tpu.matmul %30, %32, %cst_30 {dimension_numbers = #tpu.dot_dimension_numbers<[1], [0], [0], [1], [0, 0, 1, 1], [], []>} : vector<128x4xf32>, vector<4x8xf32>, vector<128x8xf32> -> vector<128x8xf32>
    %34 = arith.addf %27, %33 : vector<128x8xf32>
    %c0_31 = arith.constant 0 : index
    %c0_32 = arith.constant 0 : index
    %c0_33 = arith.constant 0 : index
    %35 = vector.load %arg6[%c0_31, %c0_32, %c0_33] : memref<3x1x8xf32, #tpu.memory_space<vmem>>, vector<1x1x8xf32>
    %36 = vector.shape_cast %35 : vector<1x1x8xf32> to vector<1x8xf32>
    %37 = vector.broadcast %36 : vector<1x8xf32> to vector<128x8xf32>
    %38 = arith.addf %34, %37 : vector<128x8xf32>
    %39 = vector.shape_cast %38 : vector<128x8xf32> to vector<1x8x16x8xf32>
    %c0_34 = arith.constant 0 : index
    %c0_35 = arith.constant 0 : index
    %c0_36 = arith.constant 0 : index
    %c0_37 = arith.constant 0 : index
    %40 = vector.load %arg7[%c0_34, %c0_35, %c0_36, %c0_37] : memref<1x8x16x24xf32, #tpu.memory_space<vmem>>, vector<1x8x16x8xf32>
    tpu.vector_store %arg7[%c0_34, %c0_35, %c0_36, %c0_37], %39 {strides = array<i32>} : memref<1x8x16x24xf32, #tpu.memory_space<vmem>>, vector<1x8x16x8xf32>,
    %c1_38 = arith.constant 1 : index
    %c0_39 = arith.constant 0 : index
    %c0_40 = arith.constant 0 : index
    %41 = vector.load %arg4[%c1_38, %c0_39, %c0_40] : memref<3x1x4xf32, #tpu.memory_space<vmem>>, vector<1x1x4xf32>
    %42 = vector.shape_cast %41 : vector<1x1x4xf32> to vector<1x4xf32>
    %43 = vector.shape_cast %42 : vector<1x4xf32> to vector<1x1x1x1x4xf32>
    %44 = vector.broadcast %43 : vector<1x1x1x1x4xf32> to vector<1x2x8x18x4xf32>
    %45 = arith.mulf %0, %44 : vector<1x2x8x18x4xf32>
    %c1_41 = arith.constant 1 : index
    %c0_42 = arith.constant 0 : index
    %c0_43 = arith.constant 0 : index
    %46 = vector.load %arg5[%c1_41, %c0_42, %c0_43] : memref<3x1x4xf32, #tpu.memory_space<vmem>>, vector<1x1x4xf32>
    %47 = vector.shape_cast %46 : vector<1x1x4xf32> to vector<1x4xf32>
    %48 = vector.shape_cast %47 : vector<1x4xf32> to vector<1x1x1x1x4xf32>
    %49 = vector.broadcast %48 : vector<1x1x1x1x4xf32> to vector<1x2x8x18x4xf32>
    %50 = arith.addf %45, %49 : vector<1x2x8x18x4xf32>
    %cst_44 = arith.constant 0.000000e+00 : f32
    %51 = vector.broadcast %cst_44 : f32 to vector<1x2x8x18x4xf32>
    %52 = arith.maximumf %50, %51 : vector<1x2x8x18x4xf32>
    %53 = arith.mulf %52, %1 : vector<1x2x8x18x4xf32>
    %54 = vector.extract_strided_slice %53 {offsets = [0, 0, 0, 0, 0], sizes = [1, 1, 8, 16, 4], strides = [1, 1, 1, 1, 1]} : vector<1x2x8x18x4xf32> to vector<1x1x8x16x4xf32>
    %55 = vector.shape_cast %54 : vector<1x1x8x16x4xf32> to vector<8x16x4xf32>
    %56 = vector.shape_cast %55 : vector<8x16x4xf32> to vector<128x4xf32>
    %c1_45 = arith.constant 1 : index
    %c0_46 = arith.constant 0 : index
    %c0_47 = arith.constant 0 : index
    %c0_48 = arith.constant 0 : index
    %c0_49 = arith.constant 0 : index
    %57 = vector.load %arg3[%c1_45, %c0_46, %c0_47, %c0_48, %c0_49] : memref<3x1x3x4x8xf32, #tpu.memory_space<vmem>>, vector<1x1x1x4x8xf32>
    %58 = vector.shape_cast %57 : vector<1x1x1x4x8xf32> to vector<4x8xf32>
    %cst_50 = arith.constant dense<0.000000e+00> : vector<128x8xf32>
    %59 = tpu.matmul %56, %58, %cst_50 {dimension_numbers = #tpu.dot_dimension_numbers<[1], [0], [0], [1], [0, 0, 1, 1], [], []>} : vector<128x4xf32>, vector<4x8xf32>, vector<128x8xf32> -> vector<128x8xf32>
    %60 = vector.extract_strided_slice %53 {offsets = [0, 0, 0, 1, 0], sizes = [1, 1, 8, 16, 4], strides = [1, 1, 1, 1, 1]} : vector<1x2x8x18x4xf32> to vector<1x1x8x16x4xf32>
    %61 = vector.shape_cast %60 : vector<1x1x8x16x4xf32> to vector<8x16x4xf32>
    %62 = vector.shape_cast %61 : vector<8x16x4xf32> to vector<128x4xf32>
    %c1_51 = arith.constant 1 : index
    %c0_52 = arith.constant 0 : index
    %c1_53 = arith.constant 1 : index
    %c0_54 = arith.constant 0 : index
    %c0_55 = arith.constant 0 : index
    %63 = vector.load %arg3[%c1_51, %c0_52, %c1_53, %c0_54, %c0_55] : memref<3x1x3x4x8xf32, #tpu.memory_space<vmem>>, vector<1x1x1x4x8xf32>
    %64 = vector.shape_cast %63 : vector<1x1x1x4x8xf32> to vector<4x8xf32>
    %cst_56 = arith.constant dense<0.000000e+00> : vector<128x8xf32>
    %65 = tpu.matmul %62, %64, %cst_56 {dimension_numbers = #tpu.dot_dimension_numbers<[1], [0], [0], [1], [0, 0, 1, 1], [], []>} : vector<128x4xf32>, vector<4x8xf32>, vector<128x8xf32> -> vector<128x8xf32>
    %66 = arith.addf %59, %65 : vector<128x8xf32>
    %67 = vector.extract_strided_slice %53 {offsets = [0, 0, 0, 2, 0], sizes = [1, 1, 8, 16, 4], strides = [1, 1, 1, 1, 1]} : vector<1x2x8x18x4xf32> to vector<1x1x8x16x4xf32>
    %68 = vector.shape_cast %67 : vector<1x1x8x16x4xf32> to vector<8x16x4xf32>
    %69 = vector.shape_cast %68 : vector<8x16x4xf32> to vector<128x4xf32>
    %c1_57 = arith.constant 1 : index
    %c0_58 = arith.constant 0 : index
    %c2_59 = arith.constant 2 : index
    %c0_60 = arith.constant 0 : index
    %c0_61 = arith.constant 0 : index
    %70 = vector.load %arg3[%c1_57, %c0_58, %c2_59, %c0_60, %c0_61] : memref<3x1x3x4x8xf32, #tpu.memory_space<vmem>>, vector<1x1x1x4x8xf32>
    %71 = vector.shape_cast %70 : vector<1x1x1x4x8xf32> to vector<4x8xf32>
    %cst_62 = arith.constant dense<0.000000e+00> : vector<128x8xf32>
    %72 = tpu.matmul %69, %71, %cst_62 {dimension_numbers = #tpu.dot_dimension_numbers<[1], [0], [0], [1], [0, 0, 1, 1], [], []>} : vector<128x4xf32>, vector<4x8xf32>, vector<128x8xf32> -> vector<128x8xf32>
    %73 = arith.addf %66, %72 : vector<128x8xf32>
    %c1_63 = arith.constant 1 : index
    %c0_64 = arith.constant 0 : index
    %c0_65 = arith.constant 0 : index
    %74 = vector.load %arg6[%c1_63, %c0_64, %c0_65] : memref<3x1x8xf32, #tpu.memory_space<vmem>>, vector<1x1x8xf32>
    %75 = vector.shape_cast %74 : vector<1x1x8xf32> to vector<1x8xf32>
    %76 = vector.broadcast %75 : vector<1x8xf32> to vector<128x8xf32>
    %77 = arith.addf %73, %76 : vector<128x8xf32>
    %78 = vector.shape_cast %77 : vector<128x8xf32> to vector<1x8x16x8xf32>
    %c0_66 = arith.constant 0 : index
    %c0_67 = arith.constant 0 : index
    %c0_68 = arith.constant 0 : index
    %c8 = arith.constant 8 : index
    %79 = vector.load %arg7[%c0_66, %c0_67, %c0_68, %c8] : memref<1x8x16x24xf32, #tpu.memory_space<vmem>>, vector<1x8x16x8xf32>
    tpu.vector_store %arg7[%c0_66, %c0_67, %c0_68, %c8], %78 {strides = array<i32>} : memref<1x8x16x24xf32, #tpu.memory_space<vmem>>, vector<1x8x16x8xf32>,
    %c2_69 = arith.constant 2 : index
    %c0_70 = arith.constant 0 : index
    %c0_71 = arith.constant 0 : index
    %80 = vector.load %arg4[%c2_69, %c0_70, %c0_71] : memref<3x1x4xf32, #tpu.memory_space<vmem>>, vector<1x1x4xf32>
    %81 = vector.shape_cast %80 : vector<1x1x4xf32> to vector<1x4xf32>
    %82 = vector.shape_cast %81 : vector<1x4xf32> to vector<1x1x1x1x4xf32>
    %83 = vector.broadcast %82 : vector<1x1x1x1x4xf32> to vector<1x2x8x18x4xf32>
    %84 = arith.mulf %0, %83 : vector<1x2x8x18x4xf32>
    %c2_72 = arith.constant 2 : index
    %c0_73 = arith.constant 0 : index
    %c0_74 = arith.constant 0 : index
    %85 = vector.load %arg5[%c2_72, %c0_73, %c0_74] : memref<3x1x4xf32, #tpu.memory_space<vmem>>, vector<1x1x4xf32>
    %86 = vector.shape_cast %85 : vector<1x1x4xf32> to vector<1x4xf32>
    %87 = vector.shape_cast %86 : vector<1x4xf32> to vector<1x1x1x1x4xf32>
    %88 = vector.broadcast %87 : vector<1x1x1x1x4xf32> to vector<1x2x8x18x4xf32>
    %89 = arith.addf %84, %88 : vector<1x2x8x18x4xf32>
    %cst_75 = arith.constant 0.000000e+00 : f32
    %90 = vector.broadcast %cst_75 : f32 to vector<1x2x8x18x4xf32>
    %91 = arith.maximumf %89, %90 : vector<1x2x8x18x4xf32>
    %92 = arith.mulf %91, %1 : vector<1x2x8x18x4xf32>
    %93 = vector.extract_strided_slice %92 {offsets = [0, 0, 0, 0, 0], sizes = [1, 1, 8, 16, 4], strides = [1, 1, 1, 1, 1]} : vector<1x2x8x18x4xf32> to vector<1x1x8x16x4xf32>
    %94 = vector.shape_cast %93 : vector<1x1x8x16x4xf32> to vector<8x16x4xf32>
    %95 = vector.shape_cast %94 : vector<8x16x4xf32> to vector<128x4xf32>
    %c2_76 = arith.constant 2 : index
    %c0_77 = arith.constant 0 : index
    %c0_78 = arith.constant 0 : index
    %c0_79 = arith.constant 0 : index
    %c0_80 = arith.constant 0 : index
    %96 = vector.load %arg3[%c2_76, %c0_77, %c0_78, %c0_79, %c0_80] : memref<3x1x3x4x8xf32, #tpu.memory_space<vmem>>, vector<1x1x1x4x8xf32>
    %97 = vector.shape_cast %96 : vector<1x1x1x4x8xf32> to vector<4x8xf32>
    %cst_81 = arith.constant dense<0.000000e+00> : vector<128x8xf32>
    %98 = tpu.matmul %95, %97, %cst_81 {dimension_numbers = #tpu.dot_dimension_numbers<[1], [0], [0], [1], [0, 0, 1, 1], [], []>} : vector<128x4xf32>, vector<4x8xf32>, vector<128x8xf32> -> vector<128x8xf32>
    %99 = vector.extract_strided_slice %92 {offsets = [0, 0, 0, 1, 0], sizes = [1, 1, 8, 16, 4], strides = [1, 1, 1, 1, 1]} : vector<1x2x8x18x4xf32> to vector<1x1x8x16x4xf32>
    %100 = vector.shape_cast %99 : vector<1x1x8x16x4xf32> to vector<8x16x4xf32>
    %101 = vector.shape_cast %100 : vector<8x16x4xf32> to vector<128x4xf32>
    %c2_82 = arith.constant 2 : index
    %c0_83 = arith.constant 0 : index
    %c1_84 = arith.constant 1 : index
    %c0_85 = arith.constant 0 : index
    %c0_86 = arith.constant 0 : index
    %102 = vector.load %arg3[%c2_82, %c0_83, %c1_84, %c0_85, %c0_86] : memref<3x1x3x4x8xf32, #tpu.memory_space<vmem>>, vector<1x1x1x4x8xf32>
    %103 = vector.shape_cast %102 : vector<1x1x1x4x8xf32> to vector<4x8xf32>
    %cst_87 = arith.constant dense<0.000000e+00> : vector<128x8xf32>
    %104 = tpu.matmul %101, %103, %cst_87 {dimension_numbers = #tpu.dot_dimension_numbers<[1], [0], [0], [1], [0, 0, 1, 1], [], []>} : vector<128x4xf32>, vector<4x8xf32>, vector<128x8xf32> -> vector<128x8xf32>
    %105 = arith.addf %98, %104 : vector<128x8xf32>
    %106 = vector.extract_strided_slice %92 {offsets = [0, 0, 0, 2, 0], sizes = [1, 1, 8, 16, 4], strides = [1, 1, 1, 1, 1]} : vector<1x2x8x18x4xf32> to vector<1x1x8x16x4xf32>
    %107 = vector.shape_cast %106 : vector<1x1x8x16x4xf32> to vector<8x16x4xf32>
    %108 = vector.shape_cast %107 : vector<8x16x4xf32> to vector<128x4xf32>
    %c2_88 = arith.constant 2 : index
    %c0_89 = arith.constant 0 : index
    %c2_90 = arith.constant 2 : index
    %c0_91 = arith.constant 0 : index
    %c0_92 = arith.constant 0 : index
    %109 = vector.load %arg3[%c2_88, %c0_89, %c2_90, %c0_91, %c0_92] : memref<3x1x3x4x8xf32, #tpu.memory_space<vmem>>, vector<1x1x1x4x8xf32>
    %110 = vector.shape_cast %109 : vector<1x1x1x4x8xf32> to vector<4x8xf32>
    %cst_93 = arith.constant dense<0.000000e+00> : vector<128x8xf32>
    %111 = tpu.matmul %108, %110, %cst_93 {dimension_numbers = #tpu.dot_dimension_numbers<[1], [0], [0], [1], [0, 0, 1, 1], [], []>} : vector<128x4xf32>, vector<4x8xf32>, vector<128x8xf32> -> vector<128x8xf32>
    %112 = arith.addf %105, %111 : vector<128x8xf32>
    %c2_94 = arith.constant 2 : index
    %c0_95 = arith.constant 0 : index
    %c0_96 = arith.constant 0 : index
    %113 = vector.load %arg6[%c2_94, %c0_95, %c0_96] : memref<3x1x8xf32, #tpu.memory_space<vmem>>, vector<1x1x8xf32>
    %114 = vector.shape_cast %113 : vector<1x1x8xf32> to vector<1x8xf32>
    %115 = vector.broadcast %114 : vector<1x8xf32> to vector<128x8xf32>
    %116 = arith.addf %112, %115 : vector<128x8xf32>
    %117 = vector.shape_cast %116 : vector<128x8xf32> to vector<1x8x16x8xf32>
    %c0_97 = arith.constant 0 : index
    %c0_98 = arith.constant 0 : index
    %c0_99 = arith.constant 0 : index
    %c16 = arith.constant 16 : index
    %118 = vector.load %arg7[%c0_97, %c0_98, %c0_99, %c16] : memref<1x8x16x24xf32, #tpu.memory_space<vmem>>, vector<1x8x16x8xf32>
    tpu.vector_store %arg7[%c0_97, %c0_98, %c0_99, %c16], %117 {strides = array<i32>} : memref<1x8x16x24xf32, #tpu.memory_space<vmem>>, vector<1x8x16x8xf32>,
    return
  }
  func.func @transform_0(%arg0: i32) -> (i32, i32, i32, i32, i32) {
    %c0_i32 = arith.constant 0 : i32
    %c0_i32_0 = arith.constant 0 : i32
    %c0_i32_1 = arith.constant 0 : i32
    %c0_i32_2 = arith.constant 0 : i32
    %c0_i32_3 = arith.constant 0 : i32
    return %arg0, %c0_i32, %c0_i32_0, %c0_i32_1, %c0_i32_2 : i32, i32, i32, i32, i32
  }
  func.func @transform_1(%arg0: i32) -> (i32, i32, i32, i32, i32) {
    %c0_i32 = arith.constant 0 : i32
    %c0_i32_0 = arith.constant 0 : i32
    %c0_i32_1 = arith.constant 0 : i32
    %c0_i32_2 = arith.constant 0 : i32
    %c0_i32_3 = arith.constant 0 : i32
    %c0_i32_4 = arith.constant 0 : i32
    return %c0_i32, %c0_i32_0, %c0_i32_1, %c0_i32_2, %c0_i32_3 : i32, i32, i32, i32, i32
  }
  func.func @transform_2(%arg0: i32) -> (i32, i32, i32, i32, i32) {
    %c0_i32 = arith.constant 0 : i32
    %c0_i32_0 = arith.constant 0 : i32
    %c0_i32_1 = arith.constant 0 : i32
    %c0_i32_2 = arith.constant 0 : i32
    %c0_i32_3 = arith.constant 0 : i32
    %c0_i32_4 = arith.constant 0 : i32
    return %c0_i32, %c0_i32_0, %c0_i32_1, %c0_i32_2, %c0_i32_3 : i32, i32, i32, i32, i32
  }
  func.func @transform_3(%arg0: i32) -> (i32, i32, i32) {
    %c0_i32 = arith.constant 0 : i32
    %c0_i32_0 = arith.constant 0 : i32
    %c0_i32_1 = arith.constant 0 : i32
    %c0_i32_2 = arith.constant 0 : i32
    return %c0_i32, %c0_i32_0, %c0_i32_1 : i32, i32, i32
  }
  func.func @transform_4(%arg0: i32) -> (i32, i32, i32) {
    %c0_i32 = arith.constant 0 : i32
    %c0_i32_0 = arith.constant 0 : i32
    %c0_i32_1 = arith.constant 0 : i32
    %c0_i32_2 = arith.constant 0 : i32
    return %c0_i32, %c0_i32_0, %c0_i32_1 : i32, i32, i32
  }
  func.func @transform_5(%arg0: i32) -> (i32, i32, i32) {
    %c0_i32 = arith.constant 0 : i32
    %c0_i32_0 = arith.constant 0 : i32
    %c0_i32_1 = arith.constant 0 : i32
    %c0_i32_2 = arith.constant 0 : i32
    return %c0_i32, %c0_i32_0, %c0_i32_1 : i32, i32, i32
  }
  func.func @transform_6(%arg0: i32) -> (i32, i32, i32, i32) {
    %c0_i32 = arith.constant 0 : i32
    %c0_i32_0 = arith.constant 0 : i32
    %c0_i32_1 = arith.constant 0 : i32
    %c0_i32_2 = arith.constant 0 : i32
    return %arg0, %c0_i32, %c0_i32_0, %c0_i32_1 : i32, i32, i32, i32
  }
}

</mosaic_0001>

<llo_original>
// kernel: _lambda_.1
$region0: #{_lambda_.1}
  #allocation0 [shape = 'u32[]', space=smem, size = 0x4, offset = 0x4, fixed_abs, tag = 'smem constant byte address 0x4 - core index']
  #allocation1 [shape = 'u32[72,128]{1,0:T(1,128)}', space=vmem, size = 0x9000, scoped, tag = 'internal scratch']
  %s0 = inlined_call_operand.vmem [shape: f32[2,2,8,18,4], index: 0, kind: input, shape index: {}]
  %s1 = inlined_call_operand.vmem [shape: f32[1,2,8,18,4], index: 1, kind: input, shape index: {}]
  %s2 = inlined_call_operand.vmem [shape: f32[3,1,3,4,8], index: 2, kind: input, shape index: {}]
  %s3 = inlined_call_operand.vmem [shape: f32[3,1,4], index: 3, kind: input, shape index: {}]
  %s4 = inlined_call_operand.vmem [shape: f32[3,1,4], index: 4, kind: input, shape index: {}]
  %s5 = inlined_call_operand.vmem [shape: f32[3,1,8], index: 5, kind: input, shape index: {}]
  %s6 = inlined_call_operand.hbm [shape: f32[2,8,16,24], index: 6, kind: output, shape index: {}]
  %s7 = sld [smem:[#allocation0]]
  $region57: #{_lambda_.1} parent=0
    _
  %s9 = ssub.s32 1, %s7
  %s10 = scalar_select 0, %s9, %s7
  $region1: #{_lambda_.1} parent=0
    #allocation2 [shape = 'u8[131072]{0}', space=vmem, size = 0x20000, scoped, tag = 'output window, operand 0']
    #allocation3 [shape = 's32[2]{0}', space=sflag, size = 0x8, scoped, tag = 'scoped memory for _lambda_.1']
    %11 = vsyncpa [#allocation3], 0
    %s12 = scalar_lea.sflag [#allocation3], 1
    %13 = vsyncpa %s12, 0
    loop: start=0, step=1, limit=4
    $region2: #{_lambda_.1} parent=1 // loop_pre_header
      _
    $region3: #{_lambda_.1} parent=1 // loop_header
      %s15 = sphi 0, %s19
      %p16 = scmp.ge.s32.totalorder %s15, 4
      %s25 = sphi 0, %s27
      %s28 = sphi 0, %s25
      %s29 = sphi 0, %s28
      %s45 = sphi 0, %s29
      %s49 = sphi 0, %s49
      %s51 = sphi 0, %s49
      %s52 = sphi 0, %s51
      %s66 = sphi 0, %s52
      %s70 = sphi 0, %s70
      %s72 = sphi 0, %s70
      %s73 = sphi 0, %s72
      %s87 = sphi 0, %s73
      %s91 = sphi 0, %s91
      %s93 = sphi 0, %s91
      %s94 = sphi 0, %s93
      %s108 = sphi 0, %s94
      %s112 = sphi 0, %s112
      %s114 = sphi 0, %s112
      %s115 = sphi 0, %s114
      %s129 = sphi 0, %s115
      %s133 = sphi 0, %s133
      %s135 = sphi 0, %s133
      %s136 = sphi 0, %s135
      %s150 = sphi 0, %s136
      %s156 = sphi 0, %s158
      %s159 = sphi 0, %s156
      %s160 = sphi 0, %s159
      %s176 = sphi 0, %s160
    $region4: #{_lambda_.1} parent=1 // loop_header_branch
      %18 = sbr.rel (%p16) target = $region8
    $region5: #{_lambda_.1} parent=1 // loop_body
      %s20 = ssub.s32 %s15, 1
      %s21 = ssub.s32 %s15, 2
      %s22 = sadd.s32 %s15, 1
      %s23 = ssub.s32 %s15, %s22
      %p24 = scmp.eq.s32.totalorder %s23, 0
      %s26 = sadd.s32 %s25, 1
      %s27 = scalar_select %p24, %s25, %s26
      %p30 = pneg %p24
      %p31 = scmp.eq.s32.totalorder %s15, 1
      %p32 = por %p30, %p31
      %p33 = scmp.ne.s32.totalorder %s25, %s28
      %p34 = scmp.eq.s32.totalorder %s15, 0
      %p35 = por %p33, %p34
      %p36 = scmp.ne.s32.totalorder %s25, %s28
      %p37 = scmp.eq.s32.totalorder %s20, 1
      %p38 = por %p36, %p37
      %p39 = scmp.ne.s32.totalorder %s28, %s29
      %p40 = scmp.eq.s32.totalorder %s20, 0
      %p41 = por %p39, %p40
      %p42 = scmp.ne.s32.totalorder %s28, %s29
      %p43 = scmp.eq.s32.totalorder %s21, 1
      %p44 = por %p42, %p43
      %p46 = scmp.ne.s32.totalorder %s29, %s45
      %p47 = scmp.eq.s32.totalorder %s21, 0
      %p48 = por %p46, %p47
      %s50 = sadd.s32 %s49, 1
      %p53 = scmp.eq.s32.totalorder %s15, 1
      %p54 = scmp.ne.s32.totalorder %s49, %s51
      %p55 = scmp.eq.s32.totalorder %s15, 0
      %p56 = por %p54, %p55
      %p57 = scmp.ne.s32.totalorder %s49, %s51
      %p58 = scmp.eq.s32.totalorder %s20, 1
      %p59 = por %p57, %p58
      %p60 = scmp.ne.s32.totalorder %s51, %s52
      %p61 = scmp.eq.s32.totalorder %s20, 0
      %p62 = por %p60, %p61
      %p63 = scmp.ne.s32.totalorder %s51, %s52
      %p64 = scmp.eq.s32.totalorder %s21, 1
      %p65 = por %p63, %p64
      %p67 = scmp.ne.s32.totalorder %s52, %s66
      %p68 = scmp.eq.s32.totalorder %s21, 0
      %p69 = por %p67, %p68
      %s71 = sadd.s32 %s70, 1
      %p74 = scmp.eq.s32.totalorder %s15, 1
      %p75 = scmp.ne.s32.totalorder %s70, %s72
      %p76 = scmp.eq.s32.totalorder %s15, 0
      %p77 = por %p75, %p76
      %p78 = scmp.ne.s32.totalorder %s70, %s72
      %p79 = scmp.eq.s32.totalorder %s20, 1
      %p80 = por %p78, %p79
      %p81 = scmp.ne.s32.totalorder %s72, %s73
      %p82 = scmp.eq.s32.totalorder %s20, 0
      %p83 = por %p81, %p82
      %p84 = scmp.ne.s32.totalorder %s72, %s73
      %p85 = scmp.eq.s32.totalorder %s21, 1
      %p86 = por %p84, %p85
      %p88 = scmp.ne.s32.totalorder %s73, %s87
      %p89 = scmp.eq.s32.totalorder %s21, 0
      %p90 = por %p88, %p89
      %s92 = sadd.s32 %s91, 1
      %p95 = scmp.eq.s32.totalorder %s15, 1
      %p96 = scmp.ne.s32.totalorder %s91, %s93
      %p97 = scmp.eq.s32.totalorder %s15, 0
      %p98 = por %p96, %p97
      %p99 = scmp.ne.s32.totalorder %s91, %s93
      %p100 = scmp.eq.s32.totalorder %s20, 1
      %p101 = por %p99, %p100
      %p102 = scmp.ne.s32.totalorder %s93, %s94
      %p103 = scmp.eq.s32.totalorder %s20, 0
      %p104 = por %p102, %p103
      %p105 = scmp.ne.s32.totalorder %s93, %s94
      %p106 = scmp.eq.s32.totalorder %s21, 1
      %p107 = por %p105, %p106
      %p109 = scmp.ne.s32.totalorder %s94, %s108
      %p110 = scmp.eq.s32.totalorder %s21, 0
      %p111 = por %p109, %p110
      %s113 = sadd.s32 %s112, 1
      %p116 = scmp.eq.s32.totalorder %s15, 1
      %p117 = scmp.ne.s32.totalorder %s112, %s114
      %p118 = scmp.eq.s32.totalorder %s15, 0
      %p119 = por %p117, %p118
      %p120 = scmp.ne.s32.totalorder %s112, %s114
      %p121 = scmp.eq.s32.totalorder %s20, 1
      %p122 = por %p120, %p121
      %p123 = scmp.ne.s32.totalorder %s114, %s115
      %p124 = scmp.eq.s32.totalorder %s20, 0
      %p125 = por %p123, %p124
      %p126 = scmp.ne.s32.totalorder %s114, %s115
      %p127 = scmp.eq.s32.totalorder %s21, 1
      %p128 = por %p126, %p127
      %p130 = scmp.ne.s32.totalorder %s115, %s129
      %p131 = scmp.eq.s32.totalorder %s21, 0
      %p132 = por %p130, %p131
      %s134 = sadd.s32 %s133, 1
      %p137 = scmp.eq.s32.totalorder %s15, 1
      %p138 = scmp.ne.s32.totalorder %s133, %s135
      %p139 = scmp.eq.s32.totalorder %s15, 0
      %p140 = por %p138, %p139
      %p141 = scmp.ne.s32.totalorder %s133, %s135
      %p142 = scmp.eq.s32.totalorder %s20, 1
      %p143 = por %p141, %p142
      %p144 = scmp.ne.s32.totalorder %s135, %s136
      %p145 = scmp.eq.s32.totalorder %s20, 0
      %p146 = por %p144, %p145
      %p147 = scmp.ne.s32.totalorder %s135, %s136
      %p148 = scmp.eq.s32.totalorder %s21, 1
      %p149 = por %p147, %p148
      %p151 = scmp.ne.s32.totalorder %s136, %s150
      %p152 = scmp.eq.s32.totalorder %s21, 0
      %p153 = por %p151, %p152
      %s154 = ssub.s32 %s15, %s22
      %p155 = scmp.eq.s32.totalorder %s154, 0
      %s157 = sadd.s32 %s156, 1
      %s158 = scalar_select %p155, %s156, %s157
      %p161 = pneg %p155
      %p162 = scmp.eq.s32.totalorder %s15, 1
      %p163 = por %p161, %p162
      %p164 = scmp.ne.s32.totalorder %s156, %s159
      %p165 = scmp.eq.s32.totalorder %s15, 0
      %p166 = por %p164, %p165
      %p167 = scmp.ne.s32.totalorder %s156, %s159
      %p168 = scmp.eq.s32.totalorder %s20, 1
      %p169 = por %p167, %p168
      %p170 = scmp.ne.s32.totalorder %s159, %s160
      %p171 = scmp.eq.s32.totalorder %s20, 0
      %p172 = por %p170, %p171
      %p173 = scmp.ne.s32.totalorder %s159, %s160
      %p174 = scmp.eq.s32.totalorder %s21, 1
      %p175 = por %p173, %p174
      %p177 = scmp.ne.s32.totalorder %s160, %s176
      %p178 = scmp.eq.s32.totalorder %s21, 0
      %p179 = por %p177, %p178
      %p180 = scmp.le.s32.totalorder 1, %s15
      %p181 = scmp.lt.s32.totalorder %s15, 3
      %p182 = pnand %p180, %p181
      %p183 = pneg %p182
      // Predicated region
      $region9: #{_lambda_.1} parent=5 // pred_check
        _
      $region10: #{_lambda_.1} parent=5 // pred_check_branch
        %185 = sbr.rel (%p182) target = $region12
      $region11: #{_lambda_.1} parent=5 // pred_region
        %s186 = ssub.s32 %s15, 1
        // Predicated region
        $region13: #{_lambda_.1} parent=11 // pred_check
          %p187 = pneg %p62
        $region14: #{_lambda_.1} parent=11 // pred_check_branch
          %189 = sbr.rel (%p187) target = $region16
        $region15: #{_lambda_.1} parent=11 // pred_region
          _
        $region16: #{_lambda_.1} parent=11 // pred_fallthru
          _
        // Predicated region
        $region17: #{_lambda_.1} parent=11 // pred_check
          %p190 = pneg %p83
        $region18: #{_lambda_.1} parent=11 // pred_check_branch
          %192 = sbr.rel (%p190) target = $region20
        $region19: #{_lambda_.1} parent=11 // pred_region
          _
        $region20: #{_lambda_.1} parent=11 // pred_fallthru
          _
        // Predicated region
        $region21: #{_lambda_.1} parent=11 // pred_check
          %p193 = pneg %p104
        $region22: #{_lambda_.1} parent=11 // pred_check_branch
          %195 = sbr.rel (%p193) target = $region24
        $region23: #{_lambda_.1} parent=11 // pred_region
          _
        $region24: #{_lambda_.1} parent=11 // pred_fallthru
          _
        // Predicated region
        $region25: #{_lambda_.1} parent=11 // pred_check
          %p196 = pneg %p125
        $region26: #{_lambda_.1} parent=11 // pred_check_branch
          %198 = sbr.rel (%p196) target = $region28
        $region27: #{_lambda_.1} parent=11 // pred_region
          _
        $region28: #{_lambda_.1} parent=11 // pred_fallthru
          _
        // Predicated region
        $region29: #{_lambda_.1} parent=11 // pred_check
          %p199 = pneg %p146
        $region30: #{_lambda_.1} parent=11 // pred_check_branch
          %201 = sbr.rel (%p199) target = $region32
        $region31: #{_lambda_.1} parent=11 // pred_region
          _
        $region32: #{_lambda_.1} parent=11 // pred_fallthru
          _
      $region12: #{_lambda_.1} parent=5 // pred_fallthru
        _
      %p202 = scmp.lt.s32.totalorder %s15, 2
      // Predicated region
      $region33: #{_lambda_.1} parent=5 // pred_check
        %p203 = pneg %p202
      $region34: #{_lambda_.1} parent=5 // pred_check_branch
        %205 = sbr.rel (%p203) target = $region36
      $region35: #{_lambda_.1} parent=5 // pred_region
        // Predicated region
        $region37: #{_lambda_.1} parent=35 // pred_check
          %p206 = pneg %p35
        $region38: #{_lambda_.1} parent=35 // pred_check_branch
          %208 = sbr.rel (%p206) target = $region40
        $region39: #{_lambda_.1} parent=35 // pred_region
          %p209 = scmp.lt.s32.totalorder %s15, 1
          %s210 = scalar_select %p209, %s15, 1
          %s211 = smul.addr %s210, 48
          %s212 = smul.addr %s211, 8
          %s213 = scalar_lea.vmem %s0, %s212
        $region40: #{_lambda_.1} parent=35 // pred_fallthru
          _
      $region36: #{_lambda_.1} parent=5 // pred_fallthru
        _
      %p214 = scmp.le.s32.totalorder 1, %s15
      %p215 = scmp.lt.s32.totalorder %s15, 3
      %p216 = pnand %p214, %p215
      %p217 = pneg %p216
      // Predicated region
      $region41: #{_lambda_.1} parent=5 // pred_check
        _
      $region42: #{_lambda_.1} parent=5 // pred_check_branch
        %219 = sbr.rel (%p216) target = $region44
      $region43: #{_lambda_.1} parent=5 // pred_region
        %s220 = ssub.s32 %s15, 1
        %p221 = scmp.lt.s32.totalorder %s20, 1
        %s222 = scalar_select %p221, %s20, 1
        %s223 = smul.addr %s222, 48
        %s224 = smul.addr %s223, 8
        %s225 = scalar_lea.vmem %s0, %s224
        %p226 = pneg %p41
        %p227 = pneg %p38
        %p228 = pneg %p62
        %p229 = pneg %p59
        %p230 = pneg %p83
        %p231 = pneg %p80
        %p232 = pneg %p104
        %p233 = pneg %p101
        %p234 = pneg %p125
        %p235 = pneg %p122
        %p236 = pneg %p146
        %p237 = pneg %p143
        %p238 = pneg %p172
        %p239 = pneg %p169
        %s240 = sand.u32 %s159, 1
        %s241 = scalar_lea.sflag [#allocation3], %s240
        %s242 = sand.u32 %s159, 1
        %s243 = smul.addr %s242, 128
        %s244 = scalar_lea.vmem [#allocation2], %s243
        %p245 = scmp.lt.s32.totalorder %s20, 1
        %s246 = scalar_select %p245, %s20, 1
        %s247 = smul.addr %s246, 48
        %s248 = smul.addr %s247, 8
        %s249 = scalar_lea.vmem %s0, %s248
        %v250 = vld [vmem:[%s249] sm:$0xff]
        %v251 = vld [vmem:[%s249 + $0x8] sm:$0xff]
        %v252 = vld [vmem:[%s249 + $0x10] sm:$0x3]
        %v253 = vld [vmem:[%s249 + $0x18] sm:$0xff]
        %v254 = vld [vmem:[%s249 + $0x20] sm:$0xff]
        %v255 = vld [vmem:[%s249 + $0x28] sm:$0x3]
        %v256 = vld [vmem:[%s249 + $0x30] sm:$0xff]
        %v257 = vld [vmem:[%s249 + $0x38] sm:$0xff]
        %v258 = vld [vmem:[%s249 + $0x40] sm:$0x3]
        %v259 = vld [vmem:[%s249 + $0x48] sm:$0xff]
        %v260 = vld [vmem:[%s249 + $0x50] sm:$0xff]
        %v261 = vld [vmem:[%s249 + $0x58] sm:$0x3]
        %v262 = vld [vmem:[%s249 + $0x60] sm:$0xff]
        %v263 = vld [vmem:[%s249 + $0x68] sm:$0xff]
        %v264 = vld [vmem:[%s249 + $0x70] sm:$0x3]
        %v265 = vld [vmem:[%s249 + $0x78] sm:$0xff]
        %v266 = vld [vmem:[%s249 + $0x80] sm:$0xff]
        %v267 = vld [vmem:[%s249 + $0x88] sm:$0x3]
        %v268 = vld [vmem:[%s249 + $0x90] sm:$0xff]
        %v269 = vld [vmem:[%s249 + $0x98] sm:$0xff]
        %v270 = vld [vmem:[%s249 + $0xa0] sm:$0x3]
        %v271 = vld [vmem:[%s249 + $0xa8] sm:$0xff]
        %v272 = vld [vmem:[%s249 + $0xb0] sm:$0xff]
        %v273 = vld [vmem:[%s249 + $0xb8] sm:$0x3]
        %v274 = vld [vmem:[%s249 + $0xc0] sm:$0xff]
        %v275 = vld [vmem:[%s249 + $0xc8] sm:$0xff]
        %v276 = vld [vmem:[%s249 + $0xd0] sm:$0x3]
        %v277 = vld [vmem:[%s249 + $0xd8] sm:$0xff]
        %v278 = vld [vmem:[%s249 + $0xe0] sm:$0xff]
        %v279 = vld [vmem:[%s249 + $0xe8] sm:$0x3]
        %v280 = vld [vmem:[%s249 + $0xf0] sm:$0xff]
        %v281 = vld [vmem:[%s249 + $0xf8] sm:$0xff]
        %v282 = vld [vmem:[%s249 + $0x100] sm:$0x3]
        %v283 = vld [vmem:[%s249 + $0x108] sm:$0xff]
        %v284 = vld [vmem:[%s249 + $0x110] sm:$0xff]
        %v285 = vld [vmem:[%s249 + $0x118] sm:$0x3]
        %v286 = vld [vmem:[%s249 + $0x120] sm:$0xff]
        %v287 = vld [vmem:[%s249 + $0x128] sm:$0xff]
        %v288 = vld [vmem:[%s249 + $0x130] sm:$0x3]
        %v289 = vld [vmem:[%s249 + $0x138] sm:$0xff]
        %v290 = vld [vmem:[%s249 + $0x140] sm:$0xff]
        %v291 = vld [vmem:[%s249 + $0x148] sm:$0x3]
        %v292 = vld [vmem:[%s249 + $0x150] sm:$0xff]
        %v293 = vld [vmem:[%s249 + $0x158] sm:$0xff]
        %v294 = vld [vmem:[%s249 + $0x160] sm:$0x3]
        %v295 = vld [vmem:[%s249 + $0x168] sm:$0xff]
        %v296 = vld [vmem:[%s249 + $0x170] sm:$0xff]
        %v297 = vld [vmem:[%s249 + $0x178] sm:$0x3]
        %v298 = vld [vmem:[%s1] sm:$0xff]
        %v299 = vld [vmem:[%s1 + $0x8] sm:$0xff]
        %v300 = vld [vmem:[%s1 + $0x10] sm:$0x3]
        %v301 = vld [vmem:[%s1 + $0x18] sm:$0xff]
        %v302 = vld [vmem:[%s1 + $0x20] sm:$0xff]
        %v303 = vld [vmem:[%s1 + $0x28] sm:$0x3]
        %v304 = vld [vmem:[%s1 + $0x30] sm:$0xff]
        %v305 = vld [vmem:[%s1 + $0x38] sm:$0xff]
        %v306 = vld [vmem:[%s1 + $0x40] sm:$0x3]
        %v307 = vld [vmem:[%s1 + $0x48] sm:$0xff]
        %v308 = vld [vmem:[%s1 + $0x50] sm:$0xff]
        %v309 = vld [vmem:[%s1 + $0x58] sm:$0x3]
        %v310 = vld [vmem:[%s1 + $0x60] sm:$0xff]
        %v311 = vld [vmem:[%s1 + $0x68] sm:$0xff]
        %v312 = vld [vmem:[%s1 + $0x70] sm:$0x3]
        %v313 = vld [vmem:[%s1 + $0x78] sm:$0xff]
        %v314 = vld [vmem:[%s1 + $0x80] sm:$0xff]
        %v315 = vld [vmem:[%s1 + $0x88] sm:$0x3]
        %v316 = vld [vmem:[%s1 + $0x90] sm:$0xff]
        %v317 = vld [vmem:[%s1 + $0x98] sm:$0xff]
        %v318 = vld [vmem:[%s1 + $0xa0] sm:$0x3]
        %v319 = vld [vmem:[%s1 + $0xa8] sm:$0xff]
        %v320 = vld [vmem:[%s1 + $0xb0] sm:$0xff]
        %v321 = vld [vmem:[%s1 + $0xb8] sm:$0x3]
        %v322 = vld [vmem:[%s1 + $0xc0] sm:$0xff]
        %v323 = vld [vmem:[%s1 + $0xc8] sm:$0xff]
        %v324 = vld [vmem:[%s1 + $0xd0] sm:$0x3]
        %v325 = vld [vmem:[%s1 + $0xd8] sm:$0xff]
        %v326 = vld [vmem:[%s1 + $0xe0] sm:$0xff]
        %v327 = vld [vmem:[%s1 + $0xe8] sm:$0x3]
        %v328 = vld [vmem:[%s1 + $0xf0] sm:$0xff]
        %v329 = vld [vmem:[%s1 + $0xf8] sm:$0xff]
        %v330 = vld [vmem:[%s1 + $0x100] sm:$0x3]
        %v331 = vld [vmem:[%s1 + $0x108] sm:$0xff]
        %v332 = vld [vmem:[%s1 + $0x110] sm:$0xff]
        %v333 = vld [vmem:[%s1 + $0x118] sm:$0x3]
        %v334 = vld [vmem:[%s1 + $0x120] sm:$0xff]
        %v335 = vld [vmem:[%s1 + $0x128] sm:$0xff]
        %v336 = vld [vmem:[%s1 + $0x130] sm:$0x3]
        %v337 = vld [vmem:[%s1 + $0x138] sm:$0xff]
        %v338 = vld [vmem:[%s1 + $0x140] sm:$0xff]
        %v339 = vld [vmem:[%s1 + $0x148] sm:$0x3]
        %v340 = vld [vmem:[%s1 + $0x150] sm:$0xff]
        %v341 = vld [vmem:[%s1 + $0x158] sm:$0xff]
        %v342 = vld [vmem:[%s1 + $0x160] sm:$0x3]
        %v343 = vld [vmem:[%s1 + $0x168] sm:$0xff]
        %v344 = vld [vmem:[%s1 + $0x170] sm:$0xff]
        %v345 = vld [vmem:[%s1 + $0x178] sm:$0x3]
        %v346 = vld [vmem:[%s3] sm:$0x1]
        %v348 = vperm.slane %v346, 0
        %v350 = vmul.f32 %v250, %v348
        %v351 = vmul.f32 %v251, %v348
        %v352 = vmul.f32 %v252, %v348
        %v353 = vmul.f32 %v253, %v348
        %v354 = vmul.f32 %v254, %v348
        %v355 = vmul.f32 %v255, %v348
        %v356 = vmul.f32 %v256, %v348
        %v357 = vmul.f32 %v257, %v348
        %v358 = vmul.f32 %v258, %v348
        %v359 = vmul.f32 %v259, %v348
        %v360 = vmul.f32 %v260, %v348
        %v361 = vmul.f32 %v261, %v348
        %v362 = vmul.f32 %v262, %v348
        %v363 = vmul.f32 %v263, %v348
        %v364 = vmul.f32 %v264, %v348
        %v365 = vmul.f32 %v265, %v348
        %v366 = vmul.f32 %v266, %v348
        %v367 = vmul.f32 %v267, %v348
        %v368 = vmul.f32 %v268, %v348
        %v369 = vmul.f32 %v269, %v348
        %v370 = vmul.f32 %v270, %v348
        %v371 = vmul.f32 %v271, %v348
        %v372 = vmul.f32 %v272, %v348
        %v373 = vmul.f32 %v273, %v348
        %v374 = vmul.f32 %v274, %v348
        %v375 = vmul.f32 %v275, %v348
        %v376 = vmul.f32 %v276, %v348
        %v377 = vmul.f32 %v277, %v348
        %v378 = vmul.f32 %v278, %v348
        %v379 = vmul.f32 %v279, %v348
        %v380 = vmul.f32 %v280, %v348
        %v381 = vmul.f32 %v281, %v348
        %v382 = vmul.f32 %v282, %v348
        %v383 = vmul.f32 %v283, %v348
        %v384 = vmul.f32 %v284, %v348
        %v385 = vmul.f32 %v285, %v348
        %v386 = vmul.f32 %v286, %v348
        %v387 = vmul.f32 %v287, %v348
        %v388 = vmul.f32 %v288, %v348
        %v389 = vmul.f32 %v289, %v348
        %v390 = vmul.f32 %v290, %v348
        %v391 = vmul.f32 %v291, %v348
        %v392 = vmul.f32 %v292, %v348
        %v393 = vmul.f32 %v293, %v348
        %v394 = vmul.f32 %v294, %v348
        %v395 = vmul.f32 %v295, %v348
        %v396 = vmul.f32 %v296, %v348
        %v397 = vmul.f32 %v297, %v348
        %v398 = vld [vmem:[%s4] sm:$0x1]
        %v400 = vperm.slane %v398, 0
        %v402 = vadd.f32 %v350, %v400
        %v403 = vadd.f32 %v351, %v400
        %v404 = vadd.f32 %v352, %v400
        %v405 = vadd.f32 %v353, %v400
        %v406 = vadd.f32 %v354, %v400
        %v407 = vadd.f32 %v355, %v400
        %v408 = vadd.f32 %v356, %v400
        %v409 = vadd.f32 %v357, %v400
        %v410 = vadd.f32 %v358, %v400
        %v411 = vadd.f32 %v359, %v400
        %v412 = vadd.f32 %v360, %v400
        %v413 = vadd.f32 %v361, %v400
        %v414 = vadd.f32 %v362, %v400
        %v415 = vadd.f32 %v363, %v400
        %v416 = vadd.f32 %v364, %v400
        %v417 = vadd.f32 %v365, %v400
        %v418 = vadd.f32 %v366, %v400
        %v419 = vadd.f32 %v367, %v400
        %v420 = vadd.f32 %v368, %v400
        %v421 = vadd.f32 %v369, %v400
        %v422 = vadd.f32 %v370, %v400
        %v423 = vadd.f32 %v371, %v400
        %v424 = vadd.f32 %v372, %v400
        %v425 = vadd.f32 %v373, %v400
        %v426 = vadd.f32 %v374, %v400
        %v427 = vadd.f32 %v375, %v400
        %v428 = vadd.f32 %v376, %v400
        %v429 = vadd.f32 %v377, %v400
        %v430 = vadd.f32 %v378, %v400
        %v431 = vadd.f32 %v379, %v400
        %v432 = vadd.f32 %v380, %v400
        %v433 = vadd.f32 %v381, %v400
        %v434 = vadd.f32 %v382, %v400
        %v435 = vadd.f32 %v383, %v400
        %v436 = vadd.f32 %v384, %v400
        %v437 = vadd.f32 %v385, %v400
        %v438 = vadd.f32 %v386, %v400
        %v439 = vadd.f32 %v387, %v400
        %v440 = vadd.f32 %v388, %v400
        %v441 = vadd.f32 %v389, %v400
        %v442 = vadd.f32 %v390, %v400
        %v443 = vadd.f32 %v391, %v400
        %v444 = vadd.f32 %v392, %v400
        %v445 = vadd.f32 %v393, %v400
        %v446 = vadd.f32 %v394, %v400
        %v447 = vadd.f32 %v395, %v400
        %v448 = vadd.f32 %v396, %v400
        %v449 = vadd.f32 %v397, %v400
        %v450 = vmax.f32 %v402, 0.0
        %v451 = vmax.f32 %v403, 0.0
        %v452 = vmax.f32 %v404, 0.0
        %v453 = vmax.f32 %v405, 0.0
        %v454 = vmax.f32 %v406, 0.0
        %v455 = vmax.f32 %v407, 0.0
        %v456 = vmax.f32 %v408, 0.0
        %v457 = vmax.f32 %v409, 0.0
        %v458 = vmax.f32 %v410, 0.0
        %v459 = vmax.f32 %v411, 0.0
        %v460 = vmax.f32 %v412, 0.0
        %v461 = vmax.f32 %v413, 0.0
        %v462 = vmax.f32 %v414, 0.0
        %v463 = vmax.f32 %v415, 0.0
        %v464 = vmax.f32 %v416, 0.0
        %v465 = vmax.f32 %v417, 0.0
        %v466 = vmax.f32 %v418, 0.0
        %v467 = vmax.f32 %v419, 0.0
        %v468 = vmax.f32 %v420, 0.0
        %v469 = vmax.f32 %v421, 0.0
        %v470 = vmax.f32 %v422, 0.0
        %v471 = vmax.f32 %v423, 0.0
        %v472 = vmax.f32 %v424, 0.0
        %v473 = vmax.f32 %v425, 0.0
        %v474 = vmax.f32 %v426, 0.0
        %v475 = vmax.f32 %v427, 0.0
        %v476 = vmax.f32 %v428, 0.0
        %v477 = vmax.f32 %v429, 0.0
        %v478 = vmax.f32 %v430, 0.0
        %v479 = vmax.f32 %v431, 0.0
        %v480 = vmax.f32 %v432, 0.0
        %v481 = vmax.f32 %v433, 0.0
        %v482 = vmax.f32 %v434, 0.0
        %v483 = vmax.f32 %v435, 0.0
        %v484 = vmax.f32 %v436, 0.0
        %v485 = vmax.f32 %v437, 0.0
        %v486 = vmax.f32 %v438, 0.0
        %v487 = vmax.f32 %v439, 0.0
        %v488 = vmax.f32 %v440, 0.0
        %v489 = vmax.f32 %v441, 0.0
        %v490 = vmax.f32 %v442, 0.0
        %v491 = vmax.f32 %v443, 0.0
        %v492 = vmax.f32 %v444, 0.0
        %v493 = vmax.f32 %v445, 0.0
        %v494 = vmax.f32 %v446, 0.0
        %v495 = vmax.f32 %v447, 0.0
        %v496 = vmax.f32 %v448, 0.0
        %v497 = vmax.f32 %v449, 0.0
        %v498 = vmul.f32 %v450, %v298
        %v499 = vmul.f32 %v451, %v299
        %v500 = vmul.f32 %v452, %v300
        %v501 = vmul.f32 %v453, %v301
        %v502 = vmul.f32 %v454, %v302
        %v503 = vmul.f32 %v455, %v303
        %v504 = vmul.f32 %v456, %v304
        %v505 = vmul.f32 %v457, %v305
        %v506 = vmul.f32 %v458, %v306
        %v507 = vmul.f32 %v459, %v307
        %v508 = vmul.f32 %v460, %v308
        %v509 = vmul.f32 %v461, %v309
        %v510 = vmul.f32 %v462, %v310
        %v511 = vmul.f32 %v463, %v311
        %v512 = vmul.f32 %v464, %v312
        %v513 = vmul.f32 %v465, %v313
        %v514 = vmul.f32 %v466, %v314
        %v515 = vmul.f32 %v467, %v315
        %v516 = vmul.f32 %v468, %v316
        %v517 = vmul.f32 %v469, %v317
        %v518 = vmul.f32 %v470, %v318
        %v519 = vmul.f32 %v471, %v319
        %v520 = vmul.f32 %v472, %v320
        %v521 = vmul.f32 %v473, %v321
        %v522 = vmul.f32 %v474, %v322
        %v523 = vmul.f32 %v475, %v323
        %v524 = vmul.f32 %v476, %v324
        %v525 = vmul.f32 %v477, %v325
        %v526 = vmul.f32 %v478, %v326
        %v527 = vmul.f32 %v479, %v327
        %v528 = vmul.f32 %v480, %v328
        %v529 = vmul.f32 %v481, %v329
        %v530 = vmul.f32 %v482, %v330
        %v531 = vmul.f32 %v483, %v331
        %v532 = vmul.f32 %v484, %v332
        %v533 = vmul.f32 %v485, %v333
        %v534 = vmul.f32 %v486, %v334
        %v535 = vmul.f32 %v487, %v335
        %v536 = vmul.f32 %v488, %v336
        %v537 = vmul.f32 %v489, %v337
        %v538 = vmul.f32 %v490, %v338
        %v539 = vmul.f32 %v491, %v339
        %v540 = vmul.f32 %v492, %v340
        %v541 = vmul.f32 %v493, %v341
        %v542 = vmul.f32 %v494, %v342
        %v543 = vmul.f32 %v495, %v343
        %v544 = vmul.f32 %v496, %v344
        %v545 = vmul.f32 %v497, %v345
        %v546 = vld [vmem:[%s2] sm:$0xf]
        %vm571 = vcmask 1046528
        %v572 = vrot.slane %v498, 1
        %v573 = vrot.slane %v499, 1
        %v574 = vsel %vm571, %v572, %v573
        %v575 = vrot.slane %v500, 1
        %v576 = vsel %vm571, %v573, %v575
        %v577 = vrot.slane %v501, 1
        %v578 = vrot.slane %v502, 1
        %v579 = vsel %vm571, %v577, %v578
        %v580 = vrot.slane %v503, 1
        %v581 = vsel %vm571, %v578, %v580
        %v582 = vrot.slane %v504, 1
        %v583 = vrot.slane %v505, 1
        %v584 = vsel %vm571, %v582, %v583
        %v585 = vrot.slane %v506, 1
        %v586 = vsel %vm571, %v583, %v585
        %v587 = vrot.slane %v507, 1
        %v588 = vrot.slane %v508, 1
        %v589 = vsel %vm571, %v587, %v588
        %v590 = vrot.slane %v509, 1
        %v591 = vsel %vm571, %v588, %v590
        %v592 = vrot.slane %v510, 1
        %v593 = vrot.slane %v511, 1
        %v594 = vsel %vm571, %v592, %v593
        %v595 = vrot.slane %v512, 1
        %v596 = vsel %vm571, %v593, %v595
        %v597 = vrot.slane %v513, 1
        %v598 = vrot.slane %v514, 1
        %v599 = vsel %vm571, %v597, %v598
        %v600 = vrot.slane %v515, 1
        %v601 = vsel %vm571, %v598, %v600
        %v602 = vrot.slane %v516, 1
        %v603 = vrot.slane %v517, 1
        %v604 = vsel %vm571, %v602, %v603
        %v605 = vrot.slane %v518, 1
        %v606 = vsel %vm571, %v603, %v605
        %v607 = vrot.slane %v519, 1
        %v608 = vrot.slane %v520, 1
        %v609 = vsel %vm571, %v607, %v608
        %v610 = vrot.slane %v521, 1
        %v611 = vsel %vm571, %v608, %v610
        %s612 = scalar_lea.vmem %s2, 4
        %v613 = vld [vmem:[%s612] sm:$0xf]
        %vm614 = vcmask 31744
        %v615 = vsel %vm614, %v574, 0
        %v617 = vsel %vm614, %v576, 0
        %v619 = vsel %vm614, %v579, 0
        %v621 = vsel %vm614, %v581, 0
        %v623 = vsel %vm614, %v584, 0
        %v625 = vsel %vm614, %v586, 0
        %v627 = vsel %vm614, %v589, 0
        %v629 = vsel %vm614, %v591, 0
        %v631 = vsel %vm614, %v594, 0
        %v633 = vsel %vm614, %v596, 0
        %v635 = vsel %vm614, %v599, 0
        %v637 = vsel %vm614, %v601, 0
        %v639 = vsel %vm614, %v604, 0
        %v641 = vsel %vm614, %v606, 0
        %v643 = vsel %vm614, %v609, 0
        %v645 = vsel %vm614, %v611, 0
        %vm647 = vcmask 1043456
        %v649 = vsel %vm647, %v613, 0
        %651 = vmatpush.msra.mxu0 0.0
        %652 = vmatpush.msra.mxu0 0.0
        %653 = vmatpush.msra.mxu0 0.0
        %654 = vmatpush.msra.mxu0 0.0
        %655 = vmatpush.msra.mxu0 0.0
        %656 = vmatpush.msra.mxu0 0.0
        %657 = vmatpush.msra.mxu0 0.0
        %658 = vmatpush.msra.mxu0 0.0
        %659 = vmatpush.msra.mxu0 0.0
        %660 = vmatpush.msra.mxu0 0.0
        %661 = vmatpush.msra.mxu0 0.0
        %662 = vmatpush.msra.mxu0 0.0
        %663 = vmatpush.msra.mxu0 0.0
        %664 = vmatpush.msra.mxu0 0.0
        %665 = vmatpush.msra.mxu0 0.0
        %666 = vmatpush.msra.mxu0 %v649
        %667 = vmatmul.f32.gmra.mxu0 %v615
        %v668 = vpop.f32.mrf.mxu0
        %v669 = vadd.f32 0.0, %v668
        %670 = vmatmul.f32.gmra.mxu0 %v617
        %v671 = vpop.f32.mrf.mxu0
        %v672 = vadd.f32 0.0, %v671
        %673 = vmatmul.f32.gmra.mxu0 %v619
        %v674 = vpop.f32.mrf.mxu0
        %v675 = vadd.f32 0.0, %v674
        %676 = vmatmul.f32.gmra.mxu0 %v621
        %v677 = vpop.f32.mrf.mxu0
        %v678 = vadd.f32 0.0, %v677
        %679 = vmatmul.f32.gmra.mxu0 %v623
        %v680 = vpop.f32.mrf.mxu0
        %v681 = vadd.f32 0.0, %v680
        %682 = vmatmul.f32.gmra.mxu0 %v625
        %v683 = vpop.f32.mrf.mxu0
        %v684 = vadd.f32 0.0, %v683
        %685 = vmatmul.f32.gmra.mxu0 %v627
        %v686 = vpop.f32.mrf.mxu0
        %v687 = vadd.f32 0.0, %v686
        %688 = vmatmul.f32.gmra.mxu0 %v629
        %v689 = vpop.f32.mrf.mxu0
        %v690 = vadd.f32 0.0, %v689
        %691 = vmatmul.f32.gmra.mxu0 %v631
        %v692 = vpop.f32.mrf.mxu0
        %v693 = vadd.f32 0.0, %v692
        %694 = vmatmul.f32.gmra.mxu0 %v633
        %v695 = vpop.f32.mrf.mxu0
        %v696 = vadd.f32 0.0, %v695
        %697 = vmatmul.f32.gmra.mxu0 %v635
        %v698 = vpop.f32.mrf.mxu0
        %v699 = vadd.f32 0.0, %v698
        %700 = vmatmul.f32.gmra.mxu0 %v637
        %v701 = vpop.f32.mrf.mxu0
        %v702 = vadd.f32 0.0, %v701
        %703 = vmatmul.f32.gmra.mxu0 %v639
        %v704 = vpop.f32.mrf.mxu0
        %v705 = vadd.f32 0.0, %v704
        %706 = vmatmul.f32.gmra.mxu0 %v641
        %v707 = vpop.f32.mrf.mxu0
        %v708 = vadd.f32 0.0, %v707
        %709 = vmatmul.f32.gmra.mxu0 %v643
        %v710 = vpop.f32.mrf.mxu0
        %v711 = vadd.f32 0.0, %v710
        %712 = vmatmul.f32.gmra.mxu0 %v645
        %v713 = vpop.f32.mrf.mxu0
        %v714 = vadd.f32 0.0, %v713
        %715 = vdwg.mxu0
        %v717 = vsel %vm614, %v522, 0
        %v720 = vsel %vm614, %v523, 0
        %v723 = vsel %vm614, %v525, 0
        %v726 = vsel %vm614, %v526, 0
        %v729 = vsel %vm614, %v528, 0
        %v732 = vsel %vm614, %v529, 0
        %v735 = vsel %vm614, %v531, 0
        %v738 = vsel %vm614, %v532, 0
        %v741 = vsel %vm614, %v534, 0
        %v744 = vsel %vm614, %v535, 0
        %v747 = vsel %vm614, %v537, 0
        %v750 = vsel %vm614, %v538, 0
        %v753 = vsel %vm614, %v540, 0
        %v756 = vsel %vm614, %v541, 0
        %v759 = vsel %vm614, %v543, 0
        %v762 = vsel %vm614, %v544, 0
        %v765 = vsel %vm647, %v546, 0
        %767 = vmatpush.msra.mxu0 0.0
        %768 = vmatpush.msra.mxu0 0.0
        %769 = vmatpush.msra.mxu0 0.0
        %770 = vmatpush.msra.mxu0 0.0
        %771 = vmatpush.msra.mxu0 0.0
        %772 = vmatpush.msra.mxu0 0.0
        %773 = vmatpush.msra.mxu0 0.0
        %774 = vmatpush.msra.mxu0 0.0
        %775 = vmatpush.msra.mxu0 0.0
        %776 = vmatpush.msra.mxu0 0.0
        %777 = vmatpush.msra.mxu0 0.0
        %778 = vmatpush.msra.mxu0 0.0
        %779 = vmatpush.msra.mxu0 0.0
        %780 = vmatpush.msra.mxu0 0.0
        %781 = vmatpush.msra.mxu0 0.0
        %782 = vmatpush.msra.mxu0 %v765
        %783 = vmatmul.f32.gmra.mxu0 %v717
        %v784 = vpop.f32.mrf.mxu0
        %v785 = vadd.f32 %v669, %v784
        %786 = vmatmul.f32.gmra.mxu0 %v720
        %v787 = vpop.f32.mrf.mxu0
        %v788 = vadd.f32 %v672, %v787
        %789 = vmatmul.f32.gmra.mxu0 %v723
        %v790 = vpop.f32.mrf.mxu0
        %v791 = vadd.f32 %v675, %v790
        %792 = vmatmul.f32.gmra.mxu0 %v726
        %v793 = vpop.f32.mrf.mxu0
        %v794 = vadd.f32 %v678, %v793
        %795 = vmatmul.f32.gmra.mxu0 %v729
        %v796 = vpop.f32.mrf.mxu0
        %v797 = vadd.f32 %v681, %v796
        %798 = vmatmul.f32.gmra.mxu0 %v732
        %v799 = vpop.f32.mrf.mxu0
        %v800 = vadd.f32 %v684, %v799
        %801 = vmatmul.f32.gmra.mxu0 %v735
        %v802 = vpop.f32.mrf.mxu0
        %v803 = vadd.f32 %v687, %v802
        %804 = vmatmul.f32.gmra.mxu0 %v738
        %v805 = vpop.f32.mrf.mxu0
        %v806 = vadd.f32 %v690, %v805
        %807 = vmatmul.f32.gmra.mxu0 %v741
        %v808 = vpop.f32.mrf.mxu0
        %v809 = vadd.f32 %v693, %v808
        %810 = vmatmul.f32.gmra.mxu0 %v744
        %v811 = vpop.f32.mrf.mxu0
        %v812 = vadd.f32 %v696, %v811
        %813 = vmatmul.f32.gmra.mxu0 %v747
        %v814 = vpop.f32.mrf.mxu0
        %v815 = vadd.f32 %v699, %v814
        %816 = vmatmul.f32.gmra.mxu0 %v750
        %v817 = vpop.f32.mrf.mxu0
        %v818 = vadd.f32 %v702, %v817
        %819 = vmatmul.f32.gmra.mxu0 %v753
        %v820 = vpop.f32.mrf.mxu0
        %v821 = vadd.f32 %v705, %v820
        %822 = vmatmul.f32.gmra.mxu0 %v756
        %v823 = vpop.f32.mrf.mxu0
        %v824 = vadd.f32 %v708, %v823
        %825 = vmatmul.f32.gmra.mxu0 %v759
        %v826 = vpop.f32.mrf.mxu0
        %v827 = vadd.f32 %v711, %v826
        %828 = vmatmul.f32.gmra.mxu0 %v762
        %v829 = vpop.f32.mrf.mxu0
        %v830 = vadd.f32 %v714, %v829
        %831 = vdwg.mxu0
        %v840 = vrot.slane %v522, 1
        %v841 = vrot.slane %v523, 1
        %v842 = vsel %vm571, %v840, %v841
        %v843 = vrot.slane %v524, 1
        %v844 = vsel %vm571, %v841, %v843
        %v845 = vrot.slane %v525, 1
        %v846 = vrot.slane %v526, 1
        %v847 = vsel %vm571, %v845, %v846
        %v848 = vrot.slane %v527, 1
        %v849 = vsel %vm571, %v846, %v848
        %v850 = vrot.slane %v528, 1
        %v851 = vrot.slane %v529, 1
        %v852 = vsel %vm571, %v850, %v851
        %v853 = vrot.slane %v530, 1
        %v854 = vsel %vm571, %v851, %v853
        %v855 = vrot.slane %v531, 1
        %v856 = vrot.slane %v532, 1
        %v857 = vsel %vm571, %v855, %v856
        %v858 = vrot.slane %v533, 1
        %v859 = vsel %vm571, %v856, %v858
        %v860 = vrot.slane %v534, 1
        %v861 = vrot.slane %v535, 1
        %v862 = vsel %vm571, %v860, %v861
        %v863 = vrot.slane %v536, 1
        %v864 = vsel %vm571, %v861, %v863
        %v865 = vrot.slane %v537, 1
        %v866 = vrot.slane %v538, 1
        %v867 = vsel %vm571, %v865, %v866
        %v868 = vrot.slane %v539, 1
        %v869 = vsel %vm571, %v866, %v868
        %v870 = vrot.slane %v540, 1
        %v871 = vrot.slane %v541, 1
        %v872 = vsel %vm571, %v870, %v871
        %v873 = vrot.slane %v542, 1
        %v874 = vsel %vm571, %v871, %v873
        %v875 = vrot.slane %v543, 1
        %v876 = vrot.slane %v544, 1
        %v877 = vsel %vm571, %v875, %v876
        %v878 = vrot.slane %v545, 1
        %v879 = vsel %vm571, %v876, %v878
        %s880 = scalar_lea.vmem %s2, 8
        %v881 = vld [vmem:[%s880] sm:$0xf]
        %v882 = vsel %vm614, %v842, 0
        %v884 = vsel %vm614, %v844, 0
        %v886 = vsel %vm614, %v847, 0
        %v888 = vsel %vm614, %v849, 0
        %v890 = vsel %vm614, %v852, 0
        %v892 = vsel %vm614, %v854, 0
        %v894 = vsel %vm614, %v857, 0
        %v896 = vsel %vm614, %v859, 0
        %v898 = vsel %vm614, %v862, 0
        %v900 = vsel %vm614, %v864, 0
        %v902 = vsel %vm614, %v867, 0
        %v904 = vsel %vm614, %v869, 0
        %v906 = vsel %vm614, %v872, 0
        %v908 = vsel %vm614, %v874, 0
        %v910 = vsel %vm614, %v877, 0
        %v912 = vsel %vm614, %v879, 0
        %v915 = vsel %vm647, %v881, 0
        %917 = vmatpush.msra.mxu0 0.0
        %918 = vmatpush.msra.mxu0 0.0
        %919 = vmatpush.msra.mxu0 0.0
        %920 = vmatpush.msra.mxu0 0.0
        %921 = vmatpush.msra.mxu0 0.0
        %922 = vmatpush.msra.mxu0 0.0
        %923 = vmatpush.msra.mxu0 0.0
        %924 = vmatpush.msra.mxu0 0.0
        %925 = vmatpush.msra.mxu0 0.0
        %926 = vmatpush.msra.mxu0 0.0
        %927 = vmatpush.msra.mxu0 0.0
        %928 = vmatpush.msra.mxu0 0.0
        %929 = vmatpush.msra.mxu0 0.0
        %930 = vmatpush.msra.mxu0 0.0
        %931 = vmatpush.msra.mxu0 0.0
        %932 = vmatpush.msra.mxu0 %v915
        %933 = vmatmul.f32.gmra.mxu0 %v882
        %v934 = vpop.f32.mrf.mxu0
        %v935 = vadd.f32 0.0, %v934
        %936 = vmatmul.f32.gmra.mxu0 %v884
        %v937 = vpop.f32.mrf.mxu0
        %v938 = vadd.f32 0.0, %v937
        %939 = vmatmul.f32.gmra.mxu0 %v886
        %v940 = vpop.f32.mrf.mxu0
        %v941 = vadd.f32 0.0, %v940
        %942 = vmatmul.f32.gmra.mxu0 %v888
        %v943 = vpop.f32.mrf.mxu0
        %v944 = vadd.f32 0.0, %v943
        %945 = vmatmul.f32.gmra.mxu0 %v890
        %v946 = vpop.f32.mrf.mxu0
        %v947 = vadd.f32 0.0, %v946
        %948 = vmatmul.f32.gmra.mxu0 %v892
        %v949 = vpop.f32.mrf.mxu0
        %v950 = vadd.f32 0.0, %v949
        %951 = vmatmul.f32.gmra.mxu0 %v894
        %v952 = vpop.f32.mrf.mxu0
        %v953 = vadd.f32 0.0, %v952
        %954 = vmatmul.f32.gmra.mxu0 %v896
        %v955 = vpop.f32.mrf.mxu0
        %v956 = vadd.f32 0.0, %v955
        %957 = vmatmul.f32.gmra.mxu0 %v898
        %v958 = vpop.f32.mrf.mxu0
        %v959 = vadd.f32 0.0, %v958
        %960 = vmatmul.f32.gmra.mxu0 %v900
        %v961 = vpop.f32.mrf.mxu0
        %v962 = vadd.f32 0.0, %v961
        %963 = vmatmul.f32.gmra.mxu0 %v902
        %v964 = vpop.f32.mrf.mxu0
        %v965 = vadd.f32 0.0, %v964
        %966 = vmatmul.f32.gmra.mxu0 %v904
        %v967 = vpop.f32.mrf.mxu0
        %v968 = vadd.f32 0.0, %v967
        %969 = vmatmul.f32.gmra.mxu0 %v906
        %v970 = vpop.f32.mrf.mxu0
        %v971 = vadd.f32 0.0, %v970
        %972 = vmatmul.f32.gmra.mxu0 %v908
        %v973 = vpop.f32.mrf.mxu0
        %v974 = vadd.f32 0.0, %v973
        %975 = vmatmul.f32.gmra.mxu0 %v910
        %v976 = vpop.f32.mrf.mxu0
        %v977 = vadd.f32 0.0, %v976
        %978 = vmatmul.f32.gmra.mxu0 %v912
        %v979 = vpop.f32.mrf.mxu0
        %v980 = vadd.f32 0.0, %v979
        %981 = vdwg.mxu0
        %v982 = vadd.f32 %v785, %v935
        %v983 = vadd.f32 %v788, %v938
        %v984 = vadd.f32 %v791, %v941
        %v985 = vadd.f32 %v794, %v944
        %v986 = vadd.f32 %v797, %v947
        %v987 = vadd.f32 %v800, %v950
        %v988 = vadd.f32 %v803, %v953
        %v989 = vadd.f32 %v806, %v956
        %v990 = vadd.f32 %v809, %v959
        %v991 = vadd.f32 %v812, %v962
        %v992 = vadd.f32 %v815, %v965
        %v993 = vadd.f32 %v818, %v968
        %v994 = vadd.f32 %v821, %v971
        %v995 = vadd.f32 %v824, %v974
        %v996 = vadd.f32 %v827, %v977
        %v997 = vadd.f32 %v830, %v980
        %v998 = vld [vmem:[%s5] sm:$0x1]
        %v1000 = vperm.slane %v998, 0
        %v1002 = vadd.f32 %v982, %v1000
        %v1003 = vadd.f32 %v983, %v1000
        %v1004 = vadd.f32 %v984, %v1000
        %v1005 = vadd.f32 %v985, %v1000
        %v1006 = vadd.f32 %v986, %v1000
        %v1007 = vadd.f32 %v987, %v1000
        %v1008 = vadd.f32 %v988, %v1000
        %v1009 = vadd.f32 %v989, %v1000
        %v1010 = vadd.f32 %v990, %v1000
        %v1011 = vadd.f32 %v991, %v1000
        %v1012 = vadd.f32 %v992, %v1000
        %v1013 = vadd.f32 %v993, %v1000
        %v1014 = vadd.f32 %v994, %v1000
        %v1015 = vadd.f32 %v995, %v1000
        %v1016 = vadd.f32 %v996, %v1000
        %v1017 = vadd.f32 %v997, %v1000
        %vm1018 = vcmask 64512
        %1019 = vst.msk [vmem:[%s244] sm:$0xff] %vm1018, %v1002
        %1020 = vst.msk [vmem:[%s244 + $0x8] sm:$0xff] %vm1018, %v1003
        %1021 = vst.msk [vmem:[%s244 + $0x10] sm:$0xff] %vm1018, %v1004
        %1022 = vst.msk [vmem:[%s244 + $0x18] sm:$0xff] %vm1018, %v1005
        %1023 = vst.msk [vmem:[%s244 + $0x20] sm:$0xff] %vm1018, %v1006
        %1024 = vst.msk [vmem:[%s244 + $0x28] sm:$0xff] %vm1018, %v1007
        %1025 = vst.msk [vmem:[%s244 + $0x30] sm:$0xff] %vm1018, %v1008
        %1026 = vst.msk [vmem:[%s244 + $0x38] sm:$0xff] %vm1018, %v1009
        %1027 = vst.msk [vmem:[%s244 + $0x40] sm:$0xff] %vm1018, %v1010
        %1028 = vst.msk [vmem:[%s244 + $0x48] sm:$0xff] %vm1018, %v1011
        %1029 = vst.msk [vmem:[%s244 + $0x50] sm:$0xff] %vm1018, %v1012
        %1030 = vst.msk [vmem:[%s244 + $0x58] sm:$0xff] %vm1018, %v1013
        %1031 = vst.msk [vmem:[%s244 + $0x60] sm:$0xff] %vm1018, %v1014
        %1032 = vst.msk [vmem:[%s244 + $0x68] sm:$0xff] %vm1018, %v1015
        %1033 = vst.msk [vmem:[%s244 + $0x70] sm:$0xff] %vm1018, %v1016
        %1034 = vst.msk [vmem:[%s244 + $0x78] sm:$0xff] %vm1018, %v1017
        %s1035 = scalar_lea.vmem %s3, 1
        %v1036 = vld [vmem:[%s1035] sm:$0x1]
        %v1038 = vperm.slane %v1036, 0
        %v1040 = vmul.f32 %v250, %v1038
        %v1041 = vmul.f32 %v251, %v1038
        %v1042 = vmul.f32 %v252, %v1038
        %v1043 = vmul.f32 %v253, %v1038
        %v1044 = vmul.f32 %v254, %v1038
        %v1045 = vmul.f32 %v255, %v1038
        %v1046 = vmul.f32 %v256, %v1038
        %v1047 = vmul.f32 %v257, %v1038
        %v1048 = vmul.f32 %v258, %v1038
        %v1049 = vmul.f32 %v259, %v1038
        %v1050 = vmul.f32 %v260, %v1038
        %v1051 = vmul.f32 %v261, %v1038
        %v1052 = vmul.f32 %v262, %v1038
        %v1053 = vmul.f32 %v263, %v1038
        %v1054 = vmul.f32 %v264, %v1038
        %v1055 = vmul.f32 %v265, %v1038
        %v1056 = vmul.f32 %v266, %v1038
        %v1057 = vmul.f32 %v267, %v1038
        %v1058 = vmul.f32 %v268, %v1038
        %v1059 = vmul.f32 %v269, %v1038
        %v1060 = vmul.f32 %v270, %v1038
        %v1061 = vmul.f32 %v271, %v1038
        %v1062 = vmul.f32 %v272, %v1038
        %v1063 = vmul.f32 %v273, %v1038
        %s1064 = scalar_lea.vmem %s4, 1
        %v1065 = vld [vmem:[%s1064] sm:$0x1]
        %v1067 = vperm.slane %v1065, 0
        %v1069 = vadd.f32 %v1040, %v1067
        %v1070 = vadd.f32 %v1041, %v1067
        %v1071 = vadd.f32 %v1042, %v1067
        %v1072 = vadd.f32 %v1043, %v1067
        %v1073 = vadd.f32 %v1044, %v1067
        %v1074 = vadd.f32 %v1045, %v1067
        %v1075 = vadd.f32 %v1046, %v1067
        %v1076 = vadd.f32 %v1047, %v1067
        %v1077 = vadd.f32 %v1048, %v1067
        %v1078 = vadd.f32 %v1049, %v1067
        %v1079 = vadd.f32 %v1050, %v1067
        %v1080 = vadd.f32 %v1051, %v1067
        %v1081 = vadd.f32 %v1052, %v1067
        %v1082 = vadd.f32 %v1053, %v1067
        %v1083 = vadd.f32 %v1054, %v1067
        %v1084 = vadd.f32 %v1055, %v1067
        %v1085 = vadd.f32 %v1056, %v1067
        %v1086 = vadd.f32 %v1057, %v1067
        %v1087 = vadd.f32 %v1058, %v1067
        %v1088 = vadd.f32 %v1059, %v1067
        %v1089 = vadd.f32 %v1060, %v1067
        %v1090 = vadd.f32 %v1061, %v1067
        %v1091 = vadd.f32 %v1062, %v1067
        %v1092 = vadd.f32 %v1063, %v1067
        %v1093 = vmax.f32 %v1069, 0.0
        %v1094 = vmax.f32 %v1070, 0.0
        %v1095 = vmax.f32 %v1071, 0.0
        %v1096 = vmax.f32 %v1072, 0.0
        %v1097 = vmax.f32 %v1073, 0.0
        %v1098 = vmax.f32 %v1074, 0.0
        %v1099 = vmax.f32 %v1075, 0.0
        %v1100 = vmax.f32 %v1076, 0.0
        %v1101 = vmax.f32 %v1077, 0.0
        %v1102 = vmax.f32 %v1078, 0.0
        %v1103 = vmax.f32 %v1079, 0.0
        %v1104 = vmax.f32 %v1080, 0.0
        %v1105 = vmax.f32 %v1081, 0.0
        %v1106 = vmax.f32 %v1082, 0.0
        %v1107 = vmax.f32 %v1083, 0.0
        %v1108 = vmax.f32 %v1084, 0.0
        %v1109 = vmax.f32 %v1085, 0.0
        %v1110 = vmax.f32 %v1086, 0.0
        %v1111 = vmax.f32 %v1087, 0.0
        %v1112 = vmax.f32 %v1088, 0.0
        %v1113 = vmax.f32 %v1089, 0.0
        %v1114 = vmax.f32 %v1090, 0.0
        %v1115 = vmax.f32 %v1091, 0.0
        %v1116 = vmax.f32 %v1092, 0.0
        %v1117 = vmul.f32 %v1093, %v298
        %v1118 = vmul.f32 %v1094, %v299
        %v1119 = vmul.f32 %v1095, %v300
        %v1120 = vmul.f32 %v1096, %v301
        %v1121 = vmul.f32 %v1097, %v302
        %v1122 = vmul.f32 %v1098, %v303
        %v1123 = vmul.f32 %v1099, %v304
        %v1124 = vmul.f32 %v1100, %v305
        %v1125 = vmul.f32 %v1101, %v306
        %v1126 = vmul.f32 %v1102, %v307
        %v1127 = vmul.f32 %v1103, %v308
        %v1128 = vmul.f32 %v1104, %v309
        %v1129 = vmul.f32 %v1105, %v310
        %v1130 = vmul.f32 %v1106, %v311
        %v1131 = vmul.f32 %v1107, %v312
        %v1132 = vmul.f32 %v1108, %v313
        %v1133 = vmul.f32 %v1109, %v314
        %v1134 = vmul.f32 %v1110, %v315
        %v1135 = vmul.f32 %v1111, %v316
        %v1136 = vmul.f32 %v1112, %v317
        %v1137 = vmul.f32 %v1113, %v318
        %v1138 = vmul.f32 %v1114, %v319
        %v1139 = vmul.f32 %v1115, %v320
        %v1140 = vmul.f32 %v1116, %v321
        %s1141 = scalar_lea.vmem %s2, 12
        %v1142 = vld [vmem:[%s1141] sm:$0xf]
        %v1167 = vrot.slane %v1117, 1
        %v1168 = vrot.slane %v1118, 1
        %v1169 = vsel %vm571, %v1167, %v1168
        %v1170 = vrot.slane %v1119, 1
        %v1171 = vsel %vm571, %v1168, %v1170
        %v1172 = vrot.slane %v1120, 1
        %v1173 = vrot.slane %v1121, 1
        %v1174 = vsel %vm571, %v1172, %v1173
        %v1175 = vrot.slane %v1122, 1
        %v1176 = vsel %vm571, %v1173, %v1175
        %v1177 = vrot.slane %v1123, 1
        %v1178 = vrot.slane %v1124, 1
        %v1179 = vsel %vm571, %v1177, %v1178
        %v1180 = vrot.slane %v1125, 1
        %v1181 = vsel %vm571, %v1178, %v1180
        %v1182 = vrot.slane %v1126, 1
        %v1183 = vrot.slane %v1127, 1
        %v1184 = vsel %vm571, %v1182, %v1183
        %v1185 = vrot.slane %v1128, 1
        %v1186 = vsel %vm571, %v1183, %v1185
        %v1187 = vrot.slane %v1129, 1
        %v1188 = vrot.slane %v1130, 1
        %v1189 = vsel %vm571, %v1187, %v1188
        %v1190 = vrot.slane %v1131, 1
        %v1191 = vsel %vm571, %v1188, %v1190
        %v1192 = vrot.slane %v1132, 1
        %v1193 = vrot.slane %v1133, 1
        %v1194 = vsel %vm571, %v1192, %v1193
        %v1195 = vrot.slane %v1134, 1
        %v1196 = vsel %vm571, %v1193, %v1195
        %v1197 = vrot.slane %v1135, 1
        %v1198 = vrot.slane %v1136, 1
        %v1199 = vsel %vm571, %v1197, %v1198
        %v1200 = vrot.slane %v1137, 1
        %v1201 = vsel %vm571, %v1198, %v1200
        %v1202 = vrot.slane %v1138, 1
        %v1203 = vrot.slane %v1139, 1
        %v1204 = vsel %vm571, %v1202, %v1203
        %v1205 = vrot.slane %v1140, 1
        %v1206 = vsel %vm571, %v1203, %v1205
        %s1207 = scalar_lea.vmem %s2, 16
        %v1208 = vld [vmem:[%s1207] sm:$0xf]
        %v1209 = vsel %vm614, %v1169, 0
        %v1211 = vsel %vm614, %v1171, 0
        %v1213 = vsel %vm614, %v1174, 0
        %v1215 = vsel %vm614, %v1176, 0
        %v1217 = vsel %vm614, %v1179, 0
        %v1219 = vsel %vm614, %v1181, 0
        %v1221 = vsel %vm614, %v1184, 0
        %v1223 = vsel %vm614, %v1186, 0
        %v1225 = vsel %vm614, %v1189, 0
        %v1227 = vsel %vm614, %v1191, 0
        %v1229 = vsel %vm614, %v1194, 0
        %v1231 = vsel %vm614, %v1196, 0
        %v1233 = vsel %vm614, %v1199, 0
        %v1235 = vsel %vm614, %v1201, 0
        %v1237 = vsel %vm614, %v1204, 0
        %v1239 = vsel %vm614, %v1206, 0
        %v1242 = vsel %vm647, %v1208, 0
        %1244 = vmatpush.msra.mxu0 0.0
        %1245 = vmatpush.msra.mxu0 0.0
        %1246 = vmatpush.msra.mxu0 0.0
        %1247 = vmatpush.msra.mxu0 0.0
        %1248 = vmatpush.msra.mxu0 0.0
        %1249 = vmatpush.msra.mxu0 0.0
        %1250 = vmatpush.msra.mxu0 0.0
        %1251 = vmatpush.msra.mxu0 0.0
        %1252 = vmatpush.msra.mxu0 0.0
        %1253 = vmatpush.msra.mxu0 0.0
        %1254 = vmatpush.msra.mxu0 0.0
        %1255 = vmatpush.msra.mxu0 0.0
        %1256 = vmatpush.msra.mxu0 0.0
        %1257 = vmatpush.msra.mxu0 0.0
        %1258 = vmatpush.msra.mxu0 0.0
        %1259 = vmatpush.msra.mxu0 %v1242
        %1260 = vmatmul.f32.gmra.mxu0 %v1209
        %v1261 = vpop.f32.mrf.mxu0
        %v1262 = vadd.f32 0.0, %v1261
        %1263 = vmatmul.f32.gmra.mxu0 %v1211
        %v1264 = vpop.f32.mrf.mxu0
        %v1265 = vadd.f32 0.0, %v1264
        %1266 = vmatmul.f32.gmra.mxu0 %v1213
        %v1267 = vpop.f32.mrf.mxu0
        %v1268 = vadd.f32 0.0, %v1267
        %1269 = vmatmul.f32.gmra.mxu0 %v1215
        %v1270 = vpop.f32.mrf.mxu0
        %v1271 = vadd.f32 0.0, %v1270
        %1272 = vmatmul.f32.gmra.mxu0 %v1217
        %v1273 = vpop.f32.mrf.mxu0
        %v1274 = vadd.f32 0.0, %v1273
        %1275 = vmatmul.f32.gmra.mxu0 %v1219
        %v1276 = vpop.f32.mrf.mxu0
        %v1277 = vadd.f32 0.0, %v1276
        %1278 = vmatmul.f32.gmra.mxu0 %v1221
        %v1279 = vpop.f32.mrf.mxu0
        %v1280 = vadd.f32 0.0, %v1279
        %1281 = vmatmul.f32.gmra.mxu0 %v1223
        %v1282 = vpop.f32.mrf.mxu0
        %v1283 = vadd.f32 0.0, %v1282
        %1284 = vmatmul.f32.gmra.mxu0 %v1225
        %v1285 = vpop.f32.mrf.mxu0
        %v1286 = vadd.f32 0.0, %v1285
        %1287 = vmatmul.f32.gmra.mxu0 %v1227
        %v1288 = vpop.f32.mrf.mxu0
        %v1289 = vadd.f32 0.0, %v1288
        %1290 = vmatmul.f32.gmra.mxu0 %v1229
        %v1291 = vpop.f32.mrf.mxu0
        %v1292 = vadd.f32 0.0, %v1291
        %1293 = vmatmul.f32.gmra.mxu0 %v1231
        %v1294 = vpop.f32.mrf.mxu0
        %v1295 = vadd.f32 0.0, %v1294
        %1296 = vmatmul.f32.gmra.mxu0 %v1233
        %v1297 = vpop.f32.mrf.mxu0
        %v1298 = vadd.f32 0.0, %v1297
        %1299 = vmatmul.f32.gmra.mxu0 %v1235
        %v1300 = vpop.f32.mrf.mxu0
        %v1301 = vadd.f32 0.0, %v1300
        %1302 = vmatmul.f32.gmra.mxu0 %v1237
        %v1303 = vpop.f32.mrf.mxu0
        %v1304 = vadd.f32 0.0, %v1303
        %1305 = vmatmul.f32.gmra.mxu0 %v1239
        %v1306 = vpop.f32.mrf.mxu0
        %v1307 = vadd.f32 0.0, %v1306
        %1308 = vdwg.mxu0
        %v1309 = vsel %vm614, %v1117, 0
        %v1311 = vsel %vm614, %v1118, 0
        %v1313 = vsel %vm614, %v1120, 0
        %v1315 = vsel %vm614, %v1121, 0
        %v1317 = vsel %vm614, %v1123, 0
        %v1319 = vsel %vm614, %v1124, 0
        %v1321 = vsel %vm614, %v1126, 0
        %v1323 = vsel %vm614, %v1127, 0
        %v1325 = vsel %vm614, %v1129, 0
        %v1327 = vsel %vm614, %v1130, 0
        %v1329 = vsel %vm614, %v1132, 0
        %v1331 = vsel %vm614, %v1133, 0
        %v1333 = vsel %vm614, %v1135, 0
        %v1335 = vsel %vm614, %v1136, 0
        %v1337 = vsel %vm614, %v1138, 0
        %v1339 = vsel %vm614, %v1139, 0
        %v1342 = vsel %vm647, %v1142, 0
        %1344 = vmatpush.msra.mxu0 0.0
        %1345 = vmatpush.msra.mxu0 0.0
        %1346 = vmatpush.msra.mxu0 0.0
        %1347 = vmatpush.msra.mxu0 0.0
        %1348 = vmatpush.msra.mxu0 0.0
        %1349 = vmatpush.msra.mxu0 0.0
        %1350 = vmatpush.msra.mxu0 0.0
        %1351 = vmatpush.msra.mxu0 0.0
        %1352 = vmatpush.msra.mxu0 0.0
        %1353 = vmatpush.msra.mxu0 0.0
        %1354 = vmatpush.msra.mxu0 0.0
        %1355 = vmatpush.msra.mxu0 0.0
        %1356 = vmatpush.msra.mxu0 0.0
        %1357 = vmatpush.msra.mxu0 0.0
        %1358 = vmatpush.msra.mxu0 0.0
        %1359 = vmatpush.msra.mxu0 %v1342
        %1360 = vmatmul.f32.gmra.mxu0 %v1309
        %v1361 = vpop.f32.mrf.mxu0
        %v1362 = vadd.f32 %v1262, %v1361
        %1363 = vmatmul.f32.gmra.mxu0 %v1311
        %v1364 = vpop.f32.mrf.mxu0
        %v1365 = vadd.f32 %v1265, %v1364
        %1366 = vmatmul.f32.gmra.mxu0 %v1313
        %v1367 = vpop.f32.mrf.mxu0
        %v1368 = vadd.f32 %v1268, %v1367
        %1369 = vmatmul.f32.gmra.mxu0 %v1315
        %v1370 = vpop.f32.mrf.mxu0
        %v1371 = vadd.f32 %v1271, %v1370
        %1372 = vmatmul.f32.gmra.mxu0 %v1317
        %v1373 = vpop.f32.mrf.mxu0
        %v1374 = vadd.f32 %v1274, %v1373
        %1375 = vmatmul.f32.gmra.mxu0 %v1319
        %v1376 = vpop.f32.mrf.mxu0
        %v1377 = vadd.f32 %v1277, %v1376
        %1378 = vmatmul.f32.gmra.mxu0 %v1321
        %v1379 = vpop.f32.mrf.mxu0
        %v1380 = vadd.f32 %v1280, %v1379
        %1381 = vmatmul.f32.gmra.mxu0 %v1323
        %v1382 = vpop.f32.mrf.mxu0
        %v1383 = vadd.f32 %v1283, %v1382
        %1384 = vmatmul.f32.gmra.mxu0 %v1325
        %v1385 = vpop.f32.mrf.mxu0
        %v1386 = vadd.f32 %v1286, %v1385
        %1387 = vmatmul.f32.gmra.mxu0 %v1327
        %v1388 = vpop.f32.mrf.mxu0
        %v1389 = vadd.f32 %v1289, %v1388
        %1390 = vmatmul.f32.gmra.mxu0 %v1329
        %v1391 = vpop.f32.mrf.mxu0
        %v1392 = vadd.f32 %v1292, %v1391
        %1393 = vmatmul.f32.gmra.mxu0 %v1331
        %v1394 = vpop.f32.mrf.mxu0
        %v1395 = vadd.f32 %v1295, %v1394
        %1396 = vmatmul.f32.gmra.mxu0 %v1333
        %v1397 = vpop.f32.mrf.mxu0
        %v1398 = vadd.f32 %v1298, %v1397
        %1399 = vmatmul.f32.gmra.mxu0 %v1335
        %v1400 = vpop.f32.mrf.mxu0
        %v1401 = vadd.f32 %v1301, %v1400
        %1402 = vmatmul.f32.gmra.mxu0 %v1337
        %v1403 = vpop.f32.mrf.mxu0
        %v1404 = vadd.f32 %v1304, %v1403
        %1405 = vmatmul.f32.gmra.mxu0 %v1339
        %v1406 = vpop.f32.mrf.mxu0
        %v1407 = vadd.f32 %v1307, %v1406
        %1408 = vdwg.mxu0
        %vm1409 = vcmask 1045504
        %v1410 = vrot.slane %v1117, 2
        %v1411 = vrot.slane %v1118, 2
        %v1412 = vsel %vm1409, %v1410, %v1411
        %v1413 = vrot.slane %v1119, 2
        %v1414 = vsel %vm1409, %v1411, %v1413
        %v1415 = vrot.slane %v1120, 2
        %v1416 = vrot.slane %v1121, 2
        %v1417 = vsel %vm1409, %v1415, %v1416
        %v1418 = vrot.slane %v1122, 2
        %v1419 = vsel %vm1409, %v1416, %v1418
        %v1420 = vrot.slane %v1123, 2
        %v1421 = vrot.slane %v1124, 2
        %v1422 = vsel %vm1409, %v1420, %v1421
        %v1423 = vrot.slane %v1125, 2
        %v1424 = vsel %vm1409, %v1421, %v1423
        %v1425 = vrot.slane %v1126, 2
        %v1426 = vrot.slane %v1127, 2
        %v1427 = vsel %vm1409, %v1425, %v1426
        %v1428 = vrot.slane %v1128, 2
        %v1429 = vsel %vm1409, %v1426, %v1428
        %v1430 = vrot.slane %v1129, 2
        %v1431 = vrot.slane %v1130, 2
        %v1432 = vsel %vm1409, %v1430, %v1431
        %v1433 = vrot.slane %v1131, 2
        %v1434 = vsel %vm1409, %v1431, %v1433
        %v1435 = vrot.slane %v1132, 2
        %v1436 = vrot.slane %v1133, 2
        %v1437 = vsel %vm1409, %v1435, %v1436
        %v1438 = vrot.slane %v1134, 2
        %v1439 = vsel %vm1409, %v1436, %v1438
        %v1440 = vrot.slane %v1135, 2
        %v1441 = vrot.slane %v1136, 2
        %v1442 = vsel %vm1409, %v1440, %v1441
        %v1443 = vrot.slane %v1137, 2
        %v1444 = vsel %vm1409, %v1441, %v1443
        %v1445 = vrot.slane %v1138, 2
        %v1446 = vrot.slane %v1139, 2
        %v1447 = vsel %vm1409, %v1445, %v1446
        %v1448 = vrot.slane %v1140, 2
        %v1449 = vsel %vm1409, %v1446, %v1448
        %s1450 = scalar_lea.vmem %s2, 20
        %v1451 = vld [vmem:[%s1450] sm:$0xf]
        %v1452 = vsel %vm614, %v1412, 0
        %v1454 = vsel %vm614, %v1414, 0
        %v1456 = vsel %vm614, %v1417, 0
        %v1458 = vsel %vm614, %v1419, 0
        %v1460 = vsel %vm614, %v1422, 0
        %v1462 = vsel %vm614, %v1424, 0
        %v1464 = vsel %vm614, %v1427, 0
        %v1466 = vsel %vm614, %v1429, 0
        %v1468 = vsel %vm614, %v1432, 0
        %v1470 = vsel %vm614, %v1434, 0
        %v1472 = vsel %vm614, %v1437, 0
        %v1474 = vsel %vm614, %v1439, 0
        %v1476 = vsel %vm614, %v1442, 0
        %v1478 = vsel %vm614, %v1444, 0
        %v1480 = vsel %vm614, %v1447, 0
        %v1482 = vsel %vm614, %v1449, 0
        %v1485 = vsel %vm647, %v1451, 0
        %1487 = vmatpush.msra.mxu0 0.0
        %1488 = vmatpush.msra.mxu0 0.0
        %1489 = vmatpush.msra.mxu0 0.0
        %1490 = vmatpush.msra.mxu0 0.0
        %1491 = vmatpush.msra.mxu0 0.0
        %1492 = vmatpush.msra.mxu0 0.0
        %1493 = vmatpush.msra.mxu0 0.0
        %1494 = vmatpush.msra.mxu0 0.0
        %1495 = vmatpush.msra.mxu0 0.0
        %1496 = vmatpush.msra.mxu0 0.0
        %1497 = vmatpush.msra.mxu0 0.0
        %1498 = vmatpush.msra.mxu0 0.0
        %1499 = vmatpush.msra.mxu0 0.0
        %1500 = vmatpush.msra.mxu0 0.0
        %1501 = vmatpush.msra.mxu0 0.0
        %1502 = vmatpush.msra.mxu0 %v1485
        %1503 = vmatmul.f32.gmra.mxu0 %v1452
        %v1504 = vpop.f32.mrf.mxu0
        %v1505 = vadd.f32 0.0, %v1504
        %1506 = vmatmul.f32.gmra.mxu0 %v1454
        %v1507 = vpop.f32.mrf.mxu0
        %v1508 = vadd.f32 0.0, %v1507
        %1509 = vmatmul.f32.gmra.mxu0 %v1456
        %v1510 = vpop.f32.mrf.mxu0
        %v1511 = vadd.f32 0.0, %v1510
        %1512 = vmatmul.f32.gmra.mxu0 %v1458
        %v1513 = vpop.f32.mrf.mxu0
        %v1514 = vadd.f32 0.0, %v1513
        %1515 = vmatmul.f32.gmra.mxu0 %v1460
        %v1516 = vpop.f32.mrf.mxu0
        %v1517 = vadd.f32 0.0, %v1516
        %1518 = vmatmul.f32.gmra.mxu0 %v1462
        %v1519 = vpop.f32.mrf.mxu0
        %v1520 = vadd.f32 0.0, %v1519
        %1521 = vmatmul.f32.gmra.mxu0 %v1464
        %v1522 = vpop.f32.mrf.mxu0
        %v1523 = vadd.f32 0.0, %v1522
        %1524 = vmatmul.f32.gmra.mxu0 %v1466
        %v1525 = vpop.f32.mrf.mxu0
        %v1526 = vadd.f32 0.0, %v1525
        %1527 = vmatmul.f32.gmra.mxu0 %v1468
        %v1528 = vpop.f32.mrf.mxu0
        %v1529 = vadd.f32 0.0, %v1528
        %1530 = vmatmul.f32.gmra.mxu0 %v1470
        %v1531 = vpop.f32.mrf.mxu0
        %v1532 = vadd.f32 0.0, %v1531
        %1533 = vmatmul.f32.gmra.mxu0 %v1472
        %v1534 = vpop.f32.mrf.mxu0
        %v1535 = vadd.f32 0.0, %v1534
        %1536 = vmatmul.f32.gmra.mxu0 %v1474
        %v1537 = vpop.f32.mrf.mxu0
        %v1538 = vadd.f32 0.0, %v1537
        %1539 = vmatmul.f32.gmra.mxu0 %v1476
        %v1540 = vpop.f32.mrf.mxu0
        %v1541 = vadd.f32 0.0, %v1540
        %1542 = vmatmul.f32.gmra.mxu0 %v1478
        %v1543 = vpop.f32.mrf.mxu0
        %v1544 = vadd.f32 0.0, %v1543
        %1545 = vmatmul.f32.gmra.mxu0 %v1480
        %v1546 = vpop.f32.mrf.mxu0
        %v1547 = vadd.f32 0.0, %v1546
        %1548 = vmatmul.f32.gmra.mxu0 %v1482
        %v1549 = vpop.f32.mrf.mxu0
        %v1550 = vadd.f32 0.0, %v1549
        %1551 = vdwg.mxu0
        %v1552 = vadd.f32 %v1362, %v1505
        %v1553 = vadd.f32 %v1365, %v1508
        %v1554 = vadd.f32 %v1368, %v1511
        %v1555 = vadd.f32 %v1371, %v1514
        %v1556 = vadd.f32 %v1374, %v1517
        %v1557 = vadd.f32 %v1377, %v1520
        %v1558 = vadd.f32 %v1380, %v1523
        %v1559 = vadd.f32 %v1383, %v1526
        %v1560 = vadd.f32 %v1386, %v1529
        %v1561 = vadd.f32 %v1389, %v1532
        %v1562 = vadd.f32 %v1392, %v1535
        %v1563 = vadd.f32 %v1395, %v1538
        %v1564 = vadd.f32 %v1398, %v1541
        %v1565 = vadd.f32 %v1401, %v1544
        %v1566 = vadd.f32 %v1404, %v1547
        %v1567 = vadd.f32 %v1407, %v1550
        %s1568 = scalar_lea.vmem %s5, 1
        %v1569 = vld [vmem:[%s1568] sm:$0x1]
        %v1571 = vperm.slane %v1569, 0
        %v1573 = vadd.f32 %v1552, %v1571
        %v1574 = vadd.f32 %v1553, %v1571
        %v1575 = vadd.f32 %v1554, %v1571
        %v1576 = vadd.f32 %v1555, %v1571
        %v1577 = vadd.f32 %v1556, %v1571
        %v1578 = vadd.f32 %v1557, %v1571
        %v1579 = vadd.f32 %v1558, %v1571
        %v1580 = vadd.f32 %v1559, %v1571
        %v1581 = vadd.f32 %v1560, %v1571
        %v1582 = vadd.f32 %v1561, %v1571
        %v1583 = vadd.f32 %v1562, %v1571
        %v1584 = vadd.f32 %v1563, %v1571
        %v1585 = vadd.f32 %v1564, %v1571
        %v1586 = vadd.f32 %v1565, %v1571
        %v1587 = vadd.f32 %v1566, %v1571
        %v1588 = vadd.f32 %v1567, %v1571
        %1605 = vrot.lane.b32.xlu0 %v1573, 8
        %v1606 = vpop.permute.xlu0 %1605
        %1607 = vrot.lane.b32.xlu0 %v1574, 8
        %v1608 = vpop.permute.xlu0 %1607
        %1609 = vrot.lane.b32.xlu0 %v1575, 8
        %v1610 = vpop.permute.xlu0 %1609
        %1611 = vrot.lane.b32.xlu0 %v1576, 8
        %v1612 = vpop.permute.xlu0 %1611
        %1613 = vrot.lane.b32.xlu0 %v1577, 8
        %v1614 = vpop.permute.xlu0 %1613
        %1615 = vrot.lane.b32.xlu0 %v1578, 8
        %v1616 = vpop.permute.xlu0 %1615
        %1617 = vrot.lane.b32.xlu0 %v1579, 8
        %v1618 = vpop.permute.xlu0 %1617
        %1619 = vrot.lane.b32.xlu0 %v1580, 8
        %v1620 = vpop.permute.xlu0 %1619
        %1621 = vrot.lane.b32.xlu0 %v1581, 8
        %v1622 = vpop.permute.xlu0 %1621
        %1623 = vrot.lane.b32.xlu0 %v1582, 8
        %v1624 = vpop.permute.xlu0 %1623
        %1625 = vrot.lane.b32.xlu0 %v1583, 8
        %v1626 = vpop.permute.xlu0 %1625
        %1627 = vrot.lane.b32.xlu0 %v1584, 8
        %v1628 = vpop.permute.xlu0 %1627
        %1629 = vrot.lane.b32.xlu0 %v1585, 8
        %v1630 = vpop.permute.xlu0 %1629
        %1631 = vrot.lane.b32.xlu0 %v1586, 8
        %v1632 = vpop.permute.xlu0 %1631
        %1633 = vrot.lane.b32.xlu0 %v1587, 8
        %v1634 = vpop.permute.xlu0 %1633
        %1635 = vrot.lane.b32.xlu0 %v1588, 8
        %v1636 = vpop.permute.xlu0 %1635
        %vm1653 = vcmask 130112
        %1654 = vst.msk [vmem:[%s244] sm:$0xff] %vm1653, %v1606
        %1655 = vst.msk [vmem:[%s244 + $0x8] sm:$0xff] %vm1653, %v1608
        %1656 = vst.msk [vmem:[%s244 + $0x10] sm:$0xff] %vm1653, %v1610
        %1657 = vst.msk [vmem:[%s244 + $0x18] sm:$0xff] %vm1653, %v1612
        %1658 = vst.msk [vmem:[%s244 + $0x20] sm:$0xff] %vm1653, %v1614
        %1659 = vst.msk [vmem:[%s244 + $0x28] sm:$0xff] %vm1653, %v1616
        %1660 = vst.msk [vmem:[%s244 + $0x30] sm:$0xff] %vm1653, %v1618
        %1661 = vst.msk [vmem:[%s244 + $0x38] sm:$0xff] %vm1653, %v1620
        %1662 = vst.msk [vmem:[%s244 + $0x40] sm:$0xff] %vm1653, %v1622
        %1663 = vst.msk [vmem:[%s244 + $0x48] sm:$0xff] %vm1653, %v1624
        %1664 = vst.msk [vmem:[%s244 + $0x50] sm:$0xff] %vm1653, %v1626
        %1665 = vst.msk [vmem:[%s244 + $0x58] sm:$0xff] %vm1653, %v1628
        %1666 = vst.msk [vmem:[%s244 + $0x60] sm:$0xff] %vm1653, %v1630
        %1667 = vst.msk [vmem:[%s244 + $0x68] sm:$0xff] %vm1653, %v1632
        %1668 = vst.msk [vmem:[%s244 + $0x70] sm:$0xff] %vm1653, %v1634
        %1669 = vst.msk [vmem:[%s244 + $0x78] sm:$0xff] %vm1653, %v1636
        %s1670 = scalar_lea.vmem %s3, 2
        %v1671 = vld [vmem:[%s1670] sm:$0x1]
        %v1673 = vperm.slane %v1671, 0
        %v1675 = vmul.f32 %v250, %v1673
        %v1676 = vmul.f32 %v251, %v1673
        %v1677 = vmul.f32 %v252, %v1673
        %v1678 = vmul.f32 %v253, %v1673
        %v1679 = vmul.f32 %v254, %v1673
        %v1680 = vmul.f32 %v255, %v1673
        %v1681 = vmul.f32 %v256, %v1673
        %v1682 = vmul.f32 %v257, %v1673
        %v1683 = vmul.f32 %v258, %v1673
        %v1684 = vmul.f32 %v259, %v1673
        %v1685 = vmul.f32 %v260, %v1673
        %v1686 = vmul.f32 %v261, %v1673
        %v1687 = vmul.f32 %v262, %v1673
        %v1688 = vmul.f32 %v263, %v1673
        %v1689 = vmul.f32 %v264, %v1673
        %v1690 = vmul.f32 %v265, %v1673
        %v1691 = vmul.f32 %v266, %v1673
        %v1692 = vmul.f32 %v267, %v1673
        %v1693 = vmul.f32 %v268, %v1673
        %v1694 = vmul.f32 %v269, %v1673
        %v1695 = vmul.f32 %v270, %v1673
        %v1696 = vmul.f32 %v271, %v1673
        %v1697 = vmul.f32 %v272, %v1673
        %v1698 = vmul.f32 %v273, %v1673
        %s1699 = scalar_lea.vmem %s4, 2
        %v1700 = vld [vmem:[%s1699] sm:$0x1]
        %v1702 = vperm.slane %v1700, 0
        %v1704 = vadd.f32 %v1675, %v1702
        %v1705 = vadd.f32 %v1676, %v1702
        %v1706 = vadd.f32 %v1677, %v1702
        %v1707 = vadd.f32 %v1678, %v1702
        %v1708 = vadd.f32 %v1679, %v1702
        %v1709 = vadd.f32 %v1680, %v1702
        %v1710 = vadd.f32 %v1681, %v1702
        %v1711 = vadd.f32 %v1682, %v1702
        %v1712 = vadd.f32 %v1683, %v1702
        %v1713 = vadd.f32 %v1684, %v1702
        %v1714 = vadd.f32 %v1685, %v1702
        %v1715 = vadd.f32 %v1686, %v1702
        %v1716 = vadd.f32 %v1687, %v1702
        %v1717 = vadd.f32 %v1688, %v1702
        %v1718 = vadd.f32 %v1689, %v1702
        %v1719 = vadd.f32 %v1690, %v1702
        %v1720 = vadd.f32 %v1691, %v1702
        %v1721 = vadd.f32 %v1692, %v1702
        %v1722 = vadd.f32 %v1693, %v1702
        %v1723 = vadd.f32 %v1694, %v1702
        %v1724 = vadd.f32 %v1695, %v1702
        %v1725 = vadd.f32 %v1696, %v1702
        %v1726 = vadd.f32 %v1697, %v1702
        %v1727 = vadd.f32 %v1698, %v1702
        %v1728 = vmax.f32 %v1704, 0.0
        %v1729 = vmax.f32 %v1705, 0.0
        %v1730 = vmax.f32 %v1706, 0.0
        %v1731 = vmax.f32 %v1707, 0.0
        %v1732 = vmax.f32 %v1708, 0.0
        %v1733 = vmax.f32 %v1709, 0.0
        %v1734 = vmax.f32 %v1710, 0.0
        %v1735 = vmax.f32 %v1711, 0.0
        %v1736 = vmax.f32 %v1712, 0.0
        %v1737 = vmax.f32 %v1713, 0.0
        %v1738 = vmax.f32 %v1714, 0.0
        %v1739 = vmax.f32 %v1715, 0.0
        %v1740 = vmax.f32 %v1716, 0.0
        %v1741 = vmax.f32 %v1717, 0.0
        %v1742 = vmax.f32 %v1718, 0.0
        %v1743 = vmax.f32 %v1719, 0.0
        %v1744 = vmax.f32 %v1720, 0.0
        %v1745 = vmax.f32 %v1721, 0.0
        %v1746 = vmax.f32 %v1722, 0.0
        %v1747 = vmax.f32 %v1723, 0.0
        %v1748 = vmax.f32 %v1724, 0.0
        %v1749 = vmax.f32 %v1725, 0.0
        %v1750 = vmax.f32 %v1726, 0.0
        %v1751 = vmax.f32 %v1727, 0.0
        %v1752 = vmul.f32 %v1728, %v298
        %v1753 = vmul.f32 %v1729, %v299
        %v1754 = vmul.f32 %v1730, %v300
        %v1755 = vmul.f32 %v1731, %v301
        %v1756 = vmul.f32 %v1732, %v302
        %v1757 = vmul.f32 %v1733, %v303
        %v1758 = vmul.f32 %v1734, %v304
        %v1759 = vmul.f32 %v1735, %v305
        %v1760 = vmul.f32 %v1736, %v306
        %v1761 = vmul.f32 %v1737, %v307
        %v1762 = vmul.f32 %v1738, %v308
        %v1763 = vmul.f32 %v1739, %v309
        %v1764 = vmul.f32 %v1740, %v310
        %v1765 = vmul.f32 %v1741, %v311
        %v1766 = vmul.f32 %v1742, %v312
        %v1767 = vmul.f32 %v1743, %v313
        %v1768 = vmul.f32 %v1744, %v314
        %v1769 = vmul.f32 %v1745, %v315
        %v1770 = vmul.f32 %v1746, %v316
        %v1771 = vmul.f32 %v1747, %v317
        %v1772 = vmul.f32 %v1748, %v318
        %v1773 = vmul.f32 %v1749, %v319
        %v1774 = vmul.f32 %v1750, %v320
        %v1775 = vmul.f32 %v1751, %v321
        %s1776 = scalar_lea.vmem %s2, 24
        %v1777 = vld [vmem:[%s1776] sm:$0xf]
        %v1802 = vrot.slane %v1752, 1
        %v1803 = vrot.slane %v1753, 1
        %v1804 = vsel %vm571, %v1802, %v1803
        %v1805 = vrot.slane %v1754, 1
        %v1806 = vsel %vm571, %v1803, %v1805
        %v1807 = vrot.slane %v1755, 1
        %v1808 = vrot.slane %v1756, 1
        %v1809 = vsel %vm571, %v1807, %v1808
        %v1810 = vrot.slane %v1757, 1
        %v1811 = vsel %vm571, %v1808, %v1810
        %v1812 = vrot.slane %v1758, 1
        %v1813 = vrot.slane %v1759, 1
        %v1814 = vsel %vm571, %v1812, %v1813
        %v1815 = vrot.slane %v1760, 1
        %v1816 = vsel %vm571, %v1813, %v1815
        %v1817 = vrot.slane %v1761, 1
        %v1818 = vrot.slane %v1762, 1
        %v1819 = vsel %vm571, %v1817, %v1818
        %v1820 = vrot.slane %v1763, 1
        %v1821 = vsel %vm571, %v1818, %v1820
        %v1822 = vrot.slane %v1764, 1
        %v1823 = vrot.slane %v1765, 1
        %v1824 = vsel %vm571, %v1822, %v1823
        %v1825 = vrot.slane %v1766, 1
        %v1826 = vsel %vm571, %v1823, %v1825
        %v1827 = vrot.slane %v1767, 1
        %v1828 = vrot.slane %v1768, 1
        %v1829 = vsel %vm571, %v1827, %v1828
        %v1830 = vrot.slane %v1769, 1
        %v1831 = vsel %vm571, %v1828, %v1830
        %v1832 = vrot.slane %v1770, 1
        %v1833 = vrot.slane %v1771, 1
        %v1834 = vsel %vm571, %v1832, %v1833
        %v1835 = vrot.slane %v1772, 1
        %v1836 = vsel %vm571, %v1833, %v1835
        %v1837 = vrot.slane %v1773, 1
        %v1838 = vrot.slane %v1774, 1
        %v1839 = vsel %vm571, %v1837, %v1838
        %v1840 = vrot.slane %v1775, 1
        %v1841 = vsel %vm571, %v1838, %v1840
        %s1842 = scalar_lea.vmem %s2, 28
        %v1843 = vld [vmem:[%s1842] sm:$0xf]
        %v1844 = vsel %vm614, %v1804, 0
        %v1846 = vsel %vm614, %v1806, 0
        %v1848 = vsel %vm614, %v1809, 0
        %v1850 = vsel %vm614, %v1811, 0
        %v1852 = vsel %vm614, %v1814, 0
        %v1854 = vsel %vm614, %v1816, 0
        %v1856 = vsel %vm614, %v1819, 0
        %v1858 = vsel %vm614, %v1821, 0
        %v1860 = vsel %vm614, %v1824, 0
        %v1862 = vsel %vm614, %v1826, 0
        %v1864 = vsel %vm614, %v1829, 0
        %v1866 = vsel %vm614, %v1831, 0
        %v1868 = vsel %vm614, %v1834, 0
        %v1870 = vsel %vm614, %v1836, 0
        %v1872 = vsel %vm614, %v1839, 0
        %v1874 = vsel %vm614, %v1841, 0
        %v1877 = vsel %vm647, %v1843, 0
        %1879 = vmatpush.msra.mxu0 0.0
        %1880 = vmatpush.msra.mxu0 0.0
        %1881 = vmatpush.msra.mxu0 0.0
        %1882 = vmatpush.msra.mxu0 0.0
        %1883 = vmatpush.msra.mxu0 0.0
        %1884 = vmatpush.msra.mxu0 0.0
        %1885 = vmatpush.msra.mxu0 0.0
        %1886 = vmatpush.msra.mxu0 0.0
        %1887 = vmatpush.msra.mxu0 0.0
        %1888 = vmatpush.msra.mxu0 0.0
        %1889 = vmatpush.msra.mxu0 0.0
        %1890 = vmatpush.msra.mxu0 0.0
        %1891 = vmatpush.msra.mxu0 0.0
        %1892 = vmatpush.msra.mxu0 0.0
        %1893 = vmatpush.msra.mxu0 0.0
        %1894 = vmatpush.msra.mxu0 %v1877
        %1895 = vmatmul.f32.gmra.mxu0 %v1844
        %v1896 = vpop.f32.mrf.mxu0
        %v1897 = vadd.f32 0.0, %v1896
        %1898 = vmatmul.f32.gmra.mxu0 %v1846
        %v1899 = vpop.f32.mrf.mxu0
        %v1900 = vadd.f32 0.0, %v1899
        %1901 = vmatmul.f32.gmra.mxu0 %v1848
        %v1902 = vpop.f32.mrf.mxu0
        %v1903 = vadd.f32 0.0, %v1902
        %1904 = vmatmul.f32.gmra.mxu0 %v1850
        %v1905 = vpop.f32.mrf.mxu0
        %v1906 = vadd.f32 0.0, %v1905
        %1907 = vmatmul.f32.gmra.mxu0 %v1852
        %v1908 = vpop.f32.mrf.mxu0
        %v1909 = vadd.f32 0.0, %v1908
        %1910 = vmatmul.f32.gmra.mxu0 %v1854
        %v1911 = vpop.f32.mrf.mxu0
        %v1912 = vadd.f32 0.0, %v1911
        %1913 = vmatmul.f32.gmra.mxu0 %v1856
        %v1914 = vpop.f32.mrf.mxu0
        %v1915 = vadd.f32 0.0, %v1914
        %1916 = vmatmul.f32.gmra.mxu0 %v1858
        %v1917 = vpop.f32.mrf.mxu0
        %v1918 = vadd.f32 0.0, %v1917
        %1919 = vmatmul.f32.gmra.mxu0 %v1860
        %v1920 = vpop.f32.mrf.mxu0
        %v1921 = vadd.f32 0.0, %v1920
        %1922 = vmatmul.f32.gmra.mxu0 %v1862
        %v1923 = vpop.f32.mrf.mxu0
        %v1924 = vadd.f32 0.0, %v1923
        %1925 = vmatmul.f32.gmra.mxu0 %v1864
        %v1926 = vpop.f32.mrf.mxu0
        %v1927 = vadd.f32 0.0, %v1926
        %1928 = vmatmul.f32.gmra.mxu0 %v1866
        %v1929 = vpop.f32.mrf.mxu0
        %v1930 = vadd.f32 0.0, %v1929
        %1931 = vmatmul.f32.gmra.mxu0 %v1868
        %v1932 = vpop.f32.mrf.mxu0
        %v1933 = vadd.f32 0.0, %v1932
        %1934 = vmatmul.f32.gmra.mxu0 %v1870
        %v1935 = vpop.f32.mrf.mxu0
        %v1936 = vadd.f32 0.0, %v1935
        %1937 = vmatmul.f32.gmra.mxu0 %v1872
        %v1938 = vpop.f32.mrf.mxu0
        %v1939 = vadd.f32 0.0, %v1938
        %1940 = vmatmul.f32.gmra.mxu0 %v1874
        %v1941 = vpop.f32.mrf.mxu0
        %v1942 = vadd.f32 0.0, %v1941
        %1943 = vdwg.mxu0
        %v1944 = vsel %vm614, %v1752, 0
        %v1946 = vsel %vm614, %v1753, 0
        %v1948 = vsel %vm614, %v1755, 0
        %v1950 = vsel %vm614, %v1756, 0
        %v1952 = vsel %vm614, %v1758, 0
        %v1954 = vsel %vm614, %v1759, 0
        %v1956 = vsel %vm614, %v1761, 0
        %v1958 = vsel %vm614, %v1762, 0
        %v1960 = vsel %vm614, %v1764, 0
        %v1962 = vsel %vm614, %v1765, 0
        %v1964 = vsel %vm614, %v1767, 0
        %v1966 = vsel %vm614, %v1768, 0
        %v1968 = vsel %vm614, %v1770, 0
        %v1970 = vsel %vm614, %v1771, 0
        %v1972 = vsel %vm614, %v1773, 0
        %v1974 = vsel %vm614, %v1774, 0
        %v1977 = vsel %vm647, %v1777, 0
        %1979 = vmatpush.msra.mxu0 0.0
        %1980 = vmatpush.msra.mxu0 0.0
        %1981 = vmatpush.msra.mxu0 0.0
        %1982 = vmatpush.msra.mxu0 0.0
        %1983 = vmatpush.msra.mxu0 0.0
        %1984 = vmatpush.msra.mxu0 0.0
        %1985 = vmatpush.msra.mxu0 0.0
        %1986 = vmatpush.msra.mxu0 0.0
        %1987 = vmatpush.msra.mxu0 0.0
        %1988 = vmatpush.msra.mxu0 0.0
        %1989 = vmatpush.msra.mxu0 0.0
        %1990 = vmatpush.msra.mxu0 0.0
        %1991 = vmatpush.msra.mxu0 0.0
        %1992 = vmatpush.msra.mxu0 0.0
        %1993 = vmatpush.msra.mxu0 0.0
        %1994 = vmatpush.msra.mxu0 %v1977
        %1995 = vmatmul.f32.gmra.mxu0 %v1944
        %v1996 = vpop.f32.mrf.mxu0
        %v1997 = vadd.f32 %v1897, %v1996
        %1998 = vmatmul.f32.gmra.mxu0 %v1946
        %v1999 = vpop.f32.mrf.mxu0
        %v2000 = vadd.f32 %v1900, %v1999
        %2001 = vmatmul.f32.gmra.mxu0 %v1948
        %v2002 = vpop.f32.mrf.mxu0
        %v2003 = vadd.f32 %v1903, %v2002
        %2004 = vmatmul.f32.gmra.mxu0 %v1950
        %v2005 = vpop.f32.mrf.mxu0
        %v2006 = vadd.f32 %v1906, %v2005
        %2007 = vmatmul.f32.gmra.mxu0 %v1952
        %v2008 = vpop.f32.mrf.mxu0
        %v2009 = vadd.f32 %v1909, %v2008
        %2010 = vmatmul.f32.gmra.mxu0 %v1954
        %v2011 = vpop.f32.mrf.mxu0
        %v2012 = vadd.f32 %v1912, %v2011
        %2013 = vmatmul.f32.gmra.mxu0 %v1956
        %v2014 = vpop.f32.mrf.mxu0
        %v2015 = vadd.f32 %v1915, %v2014
        %2016 = vmatmul.f32.gmra.mxu0 %v1958
        %v2017 = vpop.f32.mrf.mxu0
        %v2018 = vadd.f32 %v1918, %v2017
        %2019 = vmatmul.f32.gmra.mxu0 %v1960
        %v2020 = vpop.f32.mrf.mxu0
        %v2021 = vadd.f32 %v1921, %v2020
        %2022 = vmatmul.f32.gmra.mxu0 %v1962
        %v2023 = vpop.f32.mrf.mxu0
        %v2024 = vadd.f32 %v1924, %v2023
        %2025 = vmatmul.f32.gmra.mxu0 %v1964
        %v2026 = vpop.f32.mrf.mxu0
        %v2027 = vadd.f32 %v1927, %v2026
        %2028 = vmatmul.f32.gmra.mxu0 %v1966
        %v2029 = vpop.f32.mrf.mxu0
        %v2030 = vadd.f32 %v1930, %v2029
        %2031 = vmatmul.f32.gmra.mxu0 %v1968
        %v2032 = vpop.f32.mrf.mxu0
        %v2033 = vadd.f32 %v1933, %v2032
        %2034 = vmatmul.f32.gmra.mxu0 %v1970
        %v2035 = vpop.f32.mrf.mxu0
        %v2036 = vadd.f32 %v1936, %v2035
        %2037 = vmatmul.f32.gmra.mxu0 %v1972
        %v2038 = vpop.f32.mrf.mxu0
        %v2039 = vadd.f32 %v1939, %v2038
        %2040 = vmatmul.f32.gmra.mxu0 %v1974
        %v2041 = vpop.f32.mrf.mxu0
        %v2042 = vadd.f32 %v1942, %v2041
        %2043 = vdwg.mxu0
        %v2044 = vrot.slane %v1752, 2
        %v2045 = vrot.slane %v1753, 2
        %v2046 = vsel %vm1409, %v2044, %v2045
        %v2047 = vrot.slane %v1754, 2
        %v2048 = vsel %vm1409, %v2045, %v2047
        %v2049 = vrot.slane %v1755, 2
        %v2050 = vrot.slane %v1756, 2
        %v2051 = vsel %vm1409, %v2049, %v2050
        %v2052 = vrot.slane %v1757, 2
        %v2053 = vsel %vm1409, %v2050, %v2052
        %v2054 = vrot.slane %v1758, 2
        %v2055 = vrot.slane %v1759, 2
        %v2056 = vsel %vm1409, %v2054, %v2055
        %v2057 = vrot.slane %v1760, 2
        %v2058 = vsel %vm1409, %v2055, %v2057
        %v2059 = vrot.slane %v1761, 2
        %v2060 = vrot.slane %v1762, 2
        %v2061 = vsel %vm1409, %v2059, %v2060
        %v2062 = vrot.slane %v1763, 2
        %v2063 = vsel %vm1409, %v2060, %v2062
        %v2064 = vrot.slane %v1764, 2
        %v2065 = vrot.slane %v1765, 2
        %v2066 = vsel %vm1409, %v2064, %v2065
        %v2067 = vrot.slane %v1766, 2
        %v2068 = vsel %vm1409, %v2065, %v2067
        %v2069 = vrot.slane %v1767, 2
        %v2070 = vrot.slane %v1768, 2
        %v2071 = vsel %vm1409, %v2069, %v2070
        %v2072 = vrot.slane %v1769, 2
        %v2073 = vsel %vm1409, %v2070, %v2072
        %v2074 = vrot.slane %v1770, 2
        %v2075 = vrot.slane %v1771, 2
        %v2076 = vsel %vm1409, %v2074, %v2075
        %v2077 = vrot.slane %v1772, 2
        %v2078 = vsel %vm1409, %v2075, %v2077
        %v2079 = vrot.slane %v1773, 2
        %v2080 = vrot.slane %v1774, 2
        %v2081 = vsel %vm1409, %v2079, %v2080
        %v2082 = vrot.slane %v1775, 2
        %v2083 = vsel %vm1409, %v2080, %v2082
        %s2084 = scalar_lea.vmem %s2, 32
        %v2085 = vld [vmem:[%s2084] sm:$0xf]
        %v2086 = vsel %vm614, %v2046, 0
        %v2088 = vsel %vm614, %v2048, 0
        %v2090 = vsel %vm614, %v2051, 0
        %v2092 = vsel %vm614, %v2053, 0
        %v2094 = vsel %vm614, %v2056, 0
        %v2096 = vsel %vm614, %v2058, 0
        %v2098 = vsel %vm614, %v2061, 0
        %v2100 = vsel %vm614, %v2063, 0
        %v2102 = vsel %vm614, %v2066, 0
        %v2104 = vsel %vm614, %v2068, 0
        %v2106 = vsel %vm614, %v2071, 0
        %v2108 = vsel %vm614, %v2073, 0
        %v2110 = vsel %vm614, %v2076, 0
        %v2112 = vsel %vm614, %v2078, 0
        %v2114 = vsel %vm614, %v2081, 0
        %v2116 = vsel %vm614, %v2083, 0
        %v2119 = vsel %vm647, %v2085, 0
        %2121 = vmatpush.msra.mxu0 0.0
        %2122 = vmatpush.msra.mxu0 0.0
        %2123 = vmatpush.msra.mxu0 0.0
        %2124 = vmatpush.msra.mxu0 0.0
        %2125 = vmatpush.msra.mxu0 0.0
        %2126 = vmatpush.msra.mxu0 0.0
        %2127 = vmatpush.msra.mxu0 0.0
        %2128 = vmatpush.msra.mxu0 0.0
        %2129 = vmatpush.msra.mxu0 0.0
        %2130 = vmatpush.msra.mxu0 0.0
        %2131 = vmatpush.msra.mxu0 0.0
        %2132 = vmatpush.msra.mxu0 0.0
        %2133 = vmatpush.msra.mxu0 0.0
        %2134 = vmatpush.msra.mxu0 0.0
        %2135 = vmatpush.msra.mxu0 0.0
        %2136 = vmatpush.msra.mxu0 %v2119
        %2137 = vmatmul.f32.gmra.mxu0 %v2086
        %v2138 = vpop.f32.mrf.mxu0
        %v2139 = vadd.f32 0.0, %v2138
        %2140 = vmatmul.f32.gmra.mxu0 %v2088
        %v2141 = vpop.f32.mrf.mxu0
        %v2142 = vadd.f32 0.0, %v2141
        %2143 = vmatmul.f32.gmra.mxu0 %v2090
        %v2144 = vpop.f32.mrf.mxu0
        %v2145 = vadd.f32 0.0, %v2144
        %2146 = vmatmul.f32.gmra.mxu0 %v2092
        %v2147 = vpop.f32.mrf.mxu0
        %v2148 = vadd.f32 0.0, %v2147
        %2149 = vmatmul.f32.gmra.mxu0 %v2094
        %v2150 = vpop.f32.mrf.mxu0
        %v2151 = vadd.f32 0.0, %v2150
        %2152 = vmatmul.f32.gmra.mxu0 %v2096
        %v2153 = vpop.f32.mrf.mxu0
        %v2154 = vadd.f32 0.0, %v2153
        %2155 = vmatmul.f32.gmra.mxu0 %v2098
        %v2156 = vpop.f32.mrf.mxu0
        %v2157 = vadd.f32 0.0, %v2156
        %2158 = vmatmul.f32.gmra.mxu0 %v2100
        %v2159 = vpop.f32.mrf.mxu0
        %v2160 = vadd.f32 0.0, %v2159
        %2161 = vmatmul.f32.gmra.mxu0 %v2102
        %v2162 = vpop.f32.mrf.mxu0
        %v2163 = vadd.f32 0.0, %v2162
        %2164 = vmatmul.f32.gmra.mxu0 %v2104
        %v2165 = vpop.f32.mrf.mxu0
        %v2166 = vadd.f32 0.0, %v2165
        %2167 = vmatmul.f32.gmra.mxu0 %v2106
        %v2168 = vpop.f32.mrf.mxu0
        %v2169 = vadd.f32 0.0, %v2168
        %2170 = vmatmul.f32.gmra.mxu0 %v2108
        %v2171 = vpop.f32.mrf.mxu0
        %v2172 = vadd.f32 0.0, %v2171
        %2173 = vmatmul.f32.gmra.mxu0 %v2110
        %v2174 = vpop.f32.mrf.mxu0
        %v2175 = vadd.f32 0.0, %v2174
        %2176 = vmatmul.f32.gmra.mxu0 %v2112
        %v2177 = vpop.f32.mrf.mxu0
        %v2178 = vadd.f32 0.0, %v2177
        %2179 = vmatmul.f32.gmra.mxu0 %v2114
        %v2180 = vpop.f32.mrf.mxu0
        %v2181 = vadd.f32 0.0, %v2180
        %2182 = vmatmul.f32.gmra.mxu0 %v2116
        %v2183 = vpop.f32.mrf.mxu0
        %v2184 = vadd.f32 0.0, %v2183
        %2185 = vdwg.mxu0
        %v2186 = vadd.f32 %v1997, %v2139
        %v2187 = vadd.f32 %v2000, %v2142
        %v2188 = vadd.f32 %v2003, %v2145
        %v2189 = vadd.f32 %v2006, %v2148
        %v2190 = vadd.f32 %v2009, %v2151
        %v2191 = vadd.f32 %v2012, %v2154
        %v2192 = vadd.f32 %v2015, %v2157
        %v2193 = vadd.f32 %v2018, %v2160
        %v2194 = vadd.f32 %v2021, %v2163
        %v2195 = vadd.f32 %v2024, %v2166
        %v2196 = vadd.f32 %v2027, %v2169
        %v2197 = vadd.f32 %v2030, %v2172
        %v2198 = vadd.f32 %v2033, %v2175
        %v2199 = vadd.f32 %v2036, %v2178
        %v2200 = vadd.f32 %v2039, %v2181
        %v2201 = vadd.f32 %v2042, %v2184
        %s2202 = scalar_lea.vmem %s5, 2
        %v2203 = vld [vmem:[%s2202] sm:$0x1]
        %v2205 = vperm.slane %v2203, 0
        %v2207 = vadd.f32 %v2186, %v2205
        %v2208 = vadd.f32 %v2187, %v2205
        %v2209 = vadd.f32 %v2188, %v2205
        %v2210 = vadd.f32 %v2189, %v2205
        %v2211 = vadd.f32 %v2190, %v2205
        %v2212 = vadd.f32 %v2191, %v2205
        %v2213 = vadd.f32 %v2192, %v2205
        %v2214 = vadd.f32 %v2193, %v2205
        %v2215 = vadd.f32 %v2194, %v2205
        %v2216 = vadd.f32 %v2195, %v2205
        %v2217 = vadd.f32 %v2196, %v2205
        %v2218 = vadd.f32 %v2197, %v2205
        %v2219 = vadd.f32 %v2198, %v2205
        %v2220 = vadd.f32 %v2199, %v2205
        %v2221 = vadd.f32 %v2200, %v2205
        %v2222 = vadd.f32 %v2201, %v2205
        %2239 = vrot.lane.b32.xlu0 %v2207, 16
        %v2240 = vpop.permute.xlu0 %2239
        %2241 = vrot.lane.b32.xlu0 %v2208, 16
        %v2242 = vpop.permute.xlu0 %2241
        %2243 = vrot.lane.b32.xlu0 %v2209, 16
        %v2244 = vpop.permute.xlu0 %2243
        %2245 = vrot.lane.b32.xlu0 %v2210, 16
        %v2246 = vpop.permute.xlu0 %2245
        %2247 = vrot.lane.b32.xlu0 %v2211, 16
        %v2248 = vpop.permute.xlu0 %2247
        %2249 = vrot.lane.b32.xlu0 %v2212, 16
        %v2250 = vpop.permute.xlu0 %2249
        %2251 = vrot.lane.b32.xlu0 %v2213, 16
        %v2252 = vpop.permute.xlu0 %2251
        %2253 = vrot.lane.b32.xlu0 %v2214, 16
        %v2254 = vpop.permute.xlu0 %2253
        %2255 = vrot.lane.b32.xlu0 %v2215, 16
        %v2256 = vpop.permute.xlu0 %2255
        %2257 = vrot.lane.b32.xlu0 %v2216, 16
        %v2258 = vpop.permute.xlu0 %2257
        %2259 = vrot.lane.b32.xlu0 %v2217, 16
        %v2260 = vpop.permute.xlu0 %2259
        %2261 = vrot.lane.b32.xlu0 %v2218, 16
        %v2262 = vpop.permute.xlu0 %2261
        %2263 = vrot.lane.b32.xlu0 %v2219, 16
        %v2264 = vpop.permute.xlu0 %2263
        %2265 = vrot.lane.b32.xlu0 %v2220, 16
        %v2266 = vpop.permute.xlu0 %2265
        %2267 = vrot.lane.b32.xlu0 %v2221, 16
        %v2268 = vpop.permute.xlu0 %2267
        %2269 = vrot.lane.b32.xlu0 %v2222, 16
        %v2270 = vpop.permute.xlu0 %2269
        %vm2287 = vcmask 195712
        %2288 = vst.msk [vmem:[%s244] sm:$0xff] %vm2287, %v2240
        %2289 = vst.msk [vmem:[%s244 + $0x8] sm:$0xff] %vm2287, %v2242
        %2290 = vst.msk [vmem:[%s244 + $0x10] sm:$0xff] %vm2287, %v2244
        %2291 = vst.msk [vmem:[%s244 + $0x18] sm:$0xff] %vm2287, %v2246
        %2292 = vst.msk [vmem:[%s244 + $0x20] sm:$0xff] %vm2287, %v2248
        %2293 = vst.msk [vmem:[%s244 + $0x28] sm:$0xff] %vm2287, %v2250
        %2294 = vst.msk [vmem:[%s244 + $0x30] sm:$0xff] %vm2287, %v2252
        %2295 = vst.msk [vmem:[%s244 + $0x38] sm:$0xff] %vm2287, %v2254
        %2296 = vst.msk [vmem:[%s244 + $0x40] sm:$0xff] %vm2287, %v2256
        %2297 = vst.msk [vmem:[%s244 + $0x48] sm:$0xff] %vm2287, %v2258
        %2298 = vst.msk [vmem:[%s244 + $0x50] sm:$0xff] %vm2287, %v2260
        %2299 = vst.msk [vmem:[%s244 + $0x58] sm:$0xff] %vm2287, %v2262
        %2300 = vst.msk [vmem:[%s244 + $0x60] sm:$0xff] %vm2287, %v2264
        %2301 = vst.msk [vmem:[%s244 + $0x68] sm:$0xff] %vm2287, %v2266
        %2302 = vst.msk [vmem:[%s244 + $0x70] sm:$0xff] %vm2287, %v2268
        %2303 = vst.msk [vmem:[%s244 + $0x78] sm:$0xff] %vm2287, %v2270
        %s2304 = sand.u32 %s159, 1
        %s2305 = scalar_lea.sflag [#allocation3], %s2304
        %s2306 = sand.u32 %s159, 1
        %s2307 = smul.addr %s2306, 128
        %s2308 = scalar_lea.vmem [#allocation2], %s2307
        // Predicated region
        $region45: #{_lambda_.1} parent=43 // pred_check
          %p2309 = pneg %p169
        $region46: #{_lambda_.1} parent=43 // pred_check_branch
          %2311 = sbr.rel (%p2309) target = $region48
        $region47: #{_lambda_.1} parent=43 // pred_region
          %2313 = vsyncadd %s2305, 0
          %s2314 = smul.addr %s20, 16
          %s2315 = smul.addr %s2314, 8
          %s2316 = scalar_lea.hbm %s6, %s2315
          %s2317 = sshll.u32 %s2308, 4
          %s2318 = int_to_ptr.vmem [resolvable:$true] %s2317
          %s2319 = sshll.u32 %s2316, 4
          %s2320 = int_to_ptr.hbm [resolvable:$true] %s2319
          %2325 = dma.vmem_to_hbm [thread:$0]  %s2318, 2048, %s2320, %s2305, 128, 128, 8
        $region48: #{_lambda_.1} parent=43 // pred_fallthru
          _
      $region44: #{_lambda_.1} parent=5 // pred_fallthru
        _
      %p2326 = scmp.le.s32.totalorder 2, %s15
      // Predicated region
      $region49: #{_lambda_.1} parent=5 // pred_check
        %p2327 = pneg %p2326
      $region50: #{_lambda_.1} parent=5 // pred_check_branch
        %2329 = sbr.rel (%p2327) target = $region52
      $region51: #{_lambda_.1} parent=5 // pred_region
        %s2330 = ssub.s32 %s15, 2
        // Predicated region
        $region53: #{_lambda_.1} parent=51 // pred_check
          %p2331 = pneg %p175
        $region54: #{_lambda_.1} parent=51 // pred_check_branch
          %2333 = sbr.rel (%p2331) target = $region56
        $region55: #{_lambda_.1} parent=51 // pred_region
          %s2334 = sand.u32 %s160, 1
          %s2335 = scalar_lea.sflag [#allocation3], %s2334
          %s2336 = sand.u32 %s160, 1
          %s2337 = smul.addr %s2336, 128
          %s2338 = scalar_lea.vmem [#allocation2], %s2337
          %2340 = dma.done %s2335, 2048
        $region56: #{_lambda_.1} parent=51 // pred_fallthru
          _
      $region52: #{_lambda_.1} parent=5 // pred_fallthru
        _
    $region6: #{_lambda_.1} parent=1 // loop_footer
      %s19 = sadd.s32 1, %s15
    $region7: #{_lambda_.1} parent=1 // loop_footer_branch
      %14 = sbr.rel target = $region3
    $region8: #{_lambda_.1} parent=1 // loop_exit
      _
    %2341 = vsyncpa [#allocation3], 1
    %s2342 = scalar_lea.sflag [#allocation3], 1
    %2343 = vsyncpa %s2342, 1

</llo_original>
